<compile_context>
chip_gen: v5e
topology: v5e:2x2
jax: 0.10.0
libtpu: 0.0.40
codegen_flags: <defaults>
</compile_context>

<pallas_src>
import functools
import math

import jax
import jax.numpy as jnp
from jax import lax
from jax.experimental import pallas as pl
from jax.experimental.pallas import tpu as pltpu

LANE = 128


# --------------------------------------------------------------------------
# helpers
# --------------------------------------------------------------------------
def _round_up(n, m):
    return ((n + m - 1) // m) * m


def _pad2(a, rows, cols):
    out = jnp.zeros((rows, cols), a.dtype)
    return out.at[: a.shape[0], : a.shape[1]].set(a)


def _vmem_physical_bytes():
    """Physical VMEM of the current chip (fallbacks keep this robust)."""
    try:
        info = pltpu.get_tpu_info()
        v = getattr(info, "vmem_capacity_bytes", None)
        if v:
            return int(v)
    except Exception:
        pass
    try:
        kind = jax.devices()[0].device_kind.lower()
        if "v7" in kind or "tpu7" in kind:
            return 64 * 1024 * 1024
    except Exception:
        pass
    return 128 * 1024 * 1024


def _vmem_budget():
    phys = _vmem_physical_bytes()
    # scoped limit we request (v5e/v6e -> ~96 MiB, v7x -> ~48 MiB)
    limit = min(int(phys * 0.75), 100 * 1024 * 1024)
    budget = int(limit * 0.85)  # what tiling may consume (headroom for compiler)
    return limit, budget


def _tiled_vmem_bytes(tm, tk, feat_w, out_w):
    b = 2 * tm * tk * 2          # adj tiles, double-buffered, bf16
    b += 2 * tk * feat_w * 2     # neighbor-feature tiles (bf16)
    b += 2 * tm * feat_w * 2     # self-feature tiles (bf16)
    b += 2 * tm * feat_w * 2     # dropout-mask tiles (bf16, layer 1 only)
    b += 2 * tm * 4              # inv_deg
    b += 2 * tm * out_w * 4      # output tiles (f32 worst case)
    b += tm * feat_w * 4         # f32 accumulator scratch
    b += 8 * 1024 * 1024         # resident weights + compiler scratch headroom
    return b


def _fused_vmem_bytes(npad, nfeat, nhid_pad, nclass_pad):
    b = npad * npad * 2                                    # adj (bf16)
    b += npad * (nfeat + nhid_pad) * 2                     # x + dropout mask
    b += npad * 4                                          # inv_deg
    b += npad * nclass_pad * 4                             # output (f32)
    b += npad * (nfeat + 4 * nhid_pad + 2 * nclass_pad) * 4  # intermediates
    b += 4 * 1024 * 1024                                   # weights + headroom
    return 2 * b                                           # conservative


def _pick_tiles(npad, feat_w, out_w, budget, tile_cap):
    tm_cap, tk_cap = (1024, 4096) if tile_cap is None else tile_cap
    # keep >= 2 row tiles so the "parallel" axis can shard across 2 TCs (v7x)
    max_tm = npad // 2 if npad >= 256 else npad
    cands = [d for d in range(128, npad + 1, 128) if npad % d == 0]
    if not cands:
        cands = [npad]
    best = (cands[0], cands[0])
    best_area = 0
    for tm in cands:
        if tm > min(tm_cap, max_tm):
            continue
        for tk in cands:
            if tk > tk_cap:
                continue
            if _tiled_vmem_bytes(tm, tk, feat_w, out_w) > budget:
                continue
            if tm * tk > best_area:
                best_area, best = tm * tk, (tm, tk)
    return best


# --------------------------------------------------------------------------
# Fused kernel: layer1 + ReLU + dropout + layer2 + fc1 + log_softmax
# (used when everything fits in VMEM; h never touches HBM)
# --------------------------------------------------------------------------
def _gcn_fused_kernel(nclass, adj_ref, x_ref, invdeg_ref, drop_ref,
                      w1a_ref, w1b_ref, b1_ref,
                      w2a_ref, w2b_ref, b2_ref,
                      wf_ref, bf_ref, out_ref):
    adj = adj_ref[...]                      # (Np, Np) bf16 (binary -> exact)
    x = x_ref[...]                          # (Np, F)  bf16
    invdeg = invdeg_ref[...]                # (Np, 1)  f32

    # ---- GraphSage layer 1 + ReLU + dropout ----
    neigh1 = jnp.dot(adj, x, preferred_element_type=jnp.float32) * invdeg
    x32 = x.astype(jnp.float32)
    h1 = (jnp.dot(x32, w1a_ref[...], preferred_element_type=jnp.float32)
          + jnp.dot(neigh1, w1b_ref[...], preferred_element_type=jnp.float32)
          + b1_ref[...])
    h1 = jnp.maximum(h1, 0.0) * drop_ref[...].astype(jnp.float32)
    h1b = h1.astype(jnp.bfloat16)           # same quantization as tiled path

    # ---- GraphSage layer 2 ----
    neigh2 = jnp.dot(adj, h1b, preferred_element_type=jnp.float32) * invdeg
    h1_32 = h1b.astype(jnp.float32)
    h2 = (jnp.dot(h1_32, w2a_ref[...], preferred_element_type=jnp.float32)
          + jnp.dot(neigh2, w2b_ref[...], preferred_element_type=jnp.float32)
          + b2_ref[...])

    # ---- fc1 + masked log_softmax over the real classes ----
    logits = (jnp.dot(h2, wf_ref[...], preferred_element_type=jnp.float32)
              + bf_ref[...])
    col = lax.broadcasted_iota(jnp.int32, logits.shape, 1)
    masked = jnp.where(col < nclass, logits, -1e30)
    m = jnp.max(masked, axis=1, keepdims=True)
    z = masked - m
    lse = jnp.log(jnp.sum(jnp.exp(z), axis=1, keepdims=True))
    out_ref[...] = (z - lse).astype(out_ref.dtype)


# --------------------------------------------------------------------------
# Tiled kernel 1: GraphSage layer 1 + ReLU + dropout  ->  h (N, nhid_pad) bf16
# --------------------------------------------------------------------------
def _sage_layer1_kernel(adj_ref, xk_ref, xi_ref, invdeg_ref, drop_ref,
                        wa_ref, wb_ref, b_ref, h_ref, acc_ref):
    k = pl.program_id(1)

    @pl.when(k == 0)
    def _():
        acc_ref[...] = jnp.zeros_like(acc_ref)

    # neighbor aggregation: (tm, tk) bf16 @ (tk, F) bf16 -> f32 accumulator
    acc_ref[...] += jnp.dot(adj_ref[...], xk_ref[...],
                            preferred_element_type=jnp.float32)

    @pl.when(k == pl.num_programs(1) - 1)
    def _():
        neigh = acc_ref[...] * invdeg_ref[...]
        x_self = xi_ref[...].astype(jnp.float32)
        h = (jnp.dot(x_self, wa_ref[...], preferred_element_type=jnp.float32)
             + jnp.dot(neigh, wb_ref[...], preferred_element_type=jnp.float32)
             + b_ref[...])
        h = jnp.maximum(h, 0.0)                        # ReLU
        h = h * drop_ref[...].astype(jnp.float32)      # pre-scaled dropout mask
        h_ref[...] = h.astype(h_ref.dtype)             # bf16 to HBM


# --------------------------------------------------------------------------
# Tiled kernel 2: GraphSage layer 2 + fc1 + masked log_softmax
# --------------------------------------------------------------------------
def _sage_layer2_fc_kernel(nclass, adj_ref, hk_ref, hi_ref, invdeg_ref,
                           wa_ref, wb_ref, b_ref, wf_ref, bf_ref,
                           out_ref, acc_ref):
    k = pl.program_id(1)

    @pl.when(k == 0)
    def _():
        acc_ref[...] = jnp.zeros_like(acc_ref)

    acc_ref[...] += jnp.dot(adj_ref[...], hk_ref[...],
                            preferred_element_type=jnp.float32)

    @pl.when(k == pl.num_programs(1) - 1)
    def _():
        neigh = acc_ref[...] * invdeg_ref[...]
        h_self = hi_ref[...].astype(jnp.float32)
        h2 = (jnp.dot(h_self, wa_ref[...], preferred_element_type=jnp.float32)
              + jnp.dot(neigh, wb_ref[...], preferred_element_type=jnp.float32)
              + b_ref[...])
        logits = (jnp.dot(h2, wf_ref[...], preferred_element_type=jnp.float32)
                  + bf_ref[...])
        col = lax.broadcasted_iota(jnp.int32, logits.shape, 1)
        masked = jnp.where(col < nclass, logits, -1e30)
        m = jnp.max(masked, axis=1, keepdims=True)
        z = masked - m
        lse = jnp.log(jnp.sum(jnp.exp(z), axis=1, keepdims=True))
        out_ref[...] = (z - lse).astype(out_ref.dtype)


# --------------------------------------------------------------------------
# Parameter init (matches the module's glorot()/zeros())
# --------------------------------------------------------------------------
def glorot_uniform(key, shape):
    fan_in, fan_out = shape[0], shape[1]
    stdv = math.sqrt(6.0 / (fan_in + fan_out))
    return jax.random.uniform(key, shape, jnp.float32, minval=-stdv, maxval=stdv)


def init_gcn_params(key, nfeat, nhid, nclass):
    ks = jax.random.split(key, 3)
    w1 = glorot_uniform(ks[0], (2 * nfeat, nhid))
    w2 = glorot_uniform(ks[1], (2 * nhid, nhid))
    wf = glorot_uniform(ks[2], (nhid, nclass))
    return dict(
        w1a=w1[:nfeat], w1b=w1[nfeat:], b1=jnp.zeros((1, nhid), jnp.float32),
        w2a=w2[:nhid], w2b=w2[nhid:], b2=jnp.zeros((1, nhid), jnp.float32),
        wf=wf, bf=jnp.zeros((1, nclass), jnp.float32),
    )


# --------------------------------------------------------------------------
# Wrapper
# --------------------------------------------------------------------------
def gcn_forward(x, adj, params, dropout_p, drop_key, *,
                force_tiled=False, tile_cap=None):
    N, nfeat = x.shape
    nhid = params["w1a"].shape[1]
    nclass = params["wf"].shape[1]

    npad = _round_up(N, 128)
    nhid_pad = _round_up(nhid, LANE)
    nclass_pad = _round_up(nclass, LANE)

    vmem_limit, budget = _vmem_budget()

    # ---- host-side preprocessing (all HBM streams pre-cast to bf16) ----
    deg = jnp.sum(adj, axis=1, keepdims=True)
    inv_deg = jnp.ones((npad, 1), jnp.float32).at[:N].set(1.0 / (deg + 1.0))

    adj_p = jnp.zeros((npad, npad), jnp.bfloat16).at[:N, :N].set(
        adj.astype(jnp.bfloat16))
    x_p = jnp.zeros((npad, nfeat), jnp.bfloat16).at[:N].set(
        x.astype(jnp.bfloat16))

    if dropout_p > 0.0:
        keep = jax.random.uniform(drop_key, (N, nhid)) >= dropout_p
        dm = keep.astype(jnp.float32) / (1.0 - dropout_p)
    else:
        dm = jnp.ones((N, nhid), jnp.float32)
    drop_p_ = jnp.zeros((npad, nhid_pad), jnp.bfloat16).at[:N, :nhid].set(
        dm.astype(jnp.bfloat16))

    # zero-padded weights: padded rows/cols contribute exactly 0
    w1a = _pad2(params["w1a"], nfeat, nhid_pad)
    w1b = _pad2(params["w1b"], nfeat, nhid_pad)
    b1 = _pad2(params["b1"], 1, nhid_pad)
    w2a = _pad2(params["w2a"], nhid_pad, nhid_pad)
    w2b = _pad2(params["w2b"], nhid_pad, nhid_pad)
    b2 = _pad2(params["b2"], 1, nhid_pad)
    wf = _pad2(params["wf"], nhid_pad, nclass_pad)
    bf = _pad2(params["bf"], 1, nclass_pad)

    # ---------------- fused path (small graphs) ----------------
    if (not force_tiled
            and _fused_vmem_bytes(npad, nfeat, nhid_pad, nclass_pad) <= budget):
        def full2(a):
            return pl.BlockSpec(a.shape, lambda i: (0, 0))

        out_pad = pl.pallas_call(
            functools.partial(_gcn_fused_kernel, nclass),
            out_shape=jax.ShapeDtypeStruct((npad, nclass_pad), jnp.float32),
            grid=(1,),
            in_specs=[full2(adj_p), full2(x_p), full2(inv_deg), full2(drop_p_),
                      full2(w1a), full2(w1b), full2(b1),
                      full2(w2a), full2(w2b), full2(b2),
                      full2(wf), full2(bf)],
            out_specs=pl.BlockSpec((npad, nclass_pad), lambda i: (0, 0)),
            compiler_params=pltpu.CompilerParams(
                dimension_semantics=("arbitrary",),
                vmem_limit_bytes=vmem_limit),
        )(adj_p, x_p, inv_deg, drop_p_, w1a, w1b, b1, w2a, w2b, b2, wf, bf)
        return out_pad[:N, :nclass]

    # ---------------- tiled path (large graphs) ----------------
    tm, tk = _pick_tiles(npad, max(nfeat, nhid_pad),
                         max(nhid_pad, nclass_pad), budget, tile_cap)
    grid = (npad // tm, npad // tk)
    cparams = pltpu.CompilerParams(
        dimension_semantics=("parallel", "arbitrary"),
        vmem_limit_bytes=vmem_limit)

    def full(a):
        return pl.BlockSpec(a.shape, lambda i, k: (0, 0))

    # layer 1: GraphSage + ReLU + dropout -> h (bf16)
    h = pl.pallas_call(
        _sage_layer1_kernel,
        out_shape=jax.ShapeDtypeStruct((npad, nhid_pad), jnp.bfloat16),
        grid=grid,
        in_specs=[
            pl.BlockSpec((tm, tk), lambda i, k: (i, k)),        # adj tile
            pl.BlockSpec((tk, nfeat), lambda i, k: (k, 0)),     # x, neighbor rows
            pl.BlockSpec((tm, nfeat), lambda i, k: (i, 0)),     # x, self rows
            pl.BlockSpec((tm, 1), lambda i, k: (i, 0)),         # inv_deg
            pl.BlockSpec((tm, nhid_pad), lambda i, k: (i, 0)),  # dropout mask
            full(w1a), full(w1b), full(b1),
        ],
        out_specs=pl.BlockSpec((tm, nhid_pad), lambda i, k: (i, 0)),
        scratch_shapes=[pltpu.VMEM((tm, nfeat), jnp.float32)],
        compiler_params=cparams,
    )(adj_p, x_p, x_p, inv_deg, drop_p_, w1a, w1b, b1)

    # layer 2: GraphSage + fc1 + log_softmax
    out_pad = pl.pallas_call(
        functools.partial(_sage_layer2_fc_kernel, nclass),
        out_shape=jax.ShapeDtypeStruct((npad, nclass_pad), jnp.float32),
        grid=grid,
        in_specs=[
            pl.BlockSpec((tm, tk), lambda i, k: (i, k)),        # adj tile
            pl.BlockSpec((tk, nhid_pad), lambda i, k: (k, 0)),  # h, neighbor rows
            pl.BlockSpec((tm, nhid_pad), lambda i, k: (i, 0)),  # h, self rows
            pl.BlockSpec((tm, 1), lambda i, k: (i, 0)),         # inv_deg
            full(w2a), full(w2b), full(b2), full(wf), full(bf),
        ],
        out_specs=pl.BlockSpec((tm, nclass_pad), lambda i, k: (i, 0)),
        scratch_shapes=[pltpu.VMEM((tm, nhid_pad), jnp.float32)],
        compiler_params=cparams,
    )(adj_p, h, h, inv_deg, w2a, w2b, b2, wf, bf)

    return out_pad[:N, :nclass]


# --------------------------------------------------------------------------
# Pure-JAX reference (same quantization points as the kernels)
# --------------------------------------------------------------------------
def gcn_reference(x, adj, params, drop_mask):
    hp = lax.Precision.HIGHEST
    adj_q = adj.astype(jnp.bfloat16).astype(jnp.float32)
    x_q = x.astype(jnp.bfloat16).astype(jnp.float32)
    inv = 1.0 / (jnp.sum(adj, axis=1, keepdims=True) + 1.0)

    neigh1 = jnp.dot(adj_q, x_q, precision=hp) * inv
    h1 = (jnp.dot(x_q, params["w1a"], precision=hp)
          + jnp.dot(neigh1, params["w1b"], precision=hp) + params["b1"])
    h1 = jnp.maximum(h1, 0.0) * drop_mask.astype(jnp.bfloat16).astype(jnp.float32)
    h1 = h1.astype(jnp.bfloat16).astype(jnp.float32)

    neigh2 = jnp.dot(adj_q, h1, precision=hp) * inv
    h2 = (jnp.dot(h1, params["w2a"], precision=hp)
          + jnp.dot(neigh2, params["w2b"], precision=hp) + params["b2"])
    logits = jnp.dot(h2, params["wf"], precision=hp) + params["bf"]
    return jax.nn.log_softmax(logits, axis=1)


if __name__ == "__main__":
    N, nfeat, nhid, nclass = 256, 32, 32, 8
    dropout_p = 0.5

    key = jax.random.PRNGKey(0)
    kx, kadj, kparams, kdrop = jax.random.split(key, 4)

    x = jax.random.normal(kx, (N, nfeat), jnp.float32)
    a = (jax.random.uniform(kadj, (N, N)) < 0.1).astype(jnp.float32)
    adj = jnp.maximum(a, a.T)                                  # symmetric binary
    adj = adj * (1.0 - jnp.eye(N, dtype=jnp.float32))          # no self-loops

    params = init_gcn_params(kparams, nfeat, nhid, nclass)

    # fused single-kernel path (small graph: everything resident in VMEM)
    out_fused = jax.block_until_ready(
        gcn_forward(x, adj, params, dropout_p, kdrop))
    # tiled two-kernel path (large-graph code path), forced small tiles so the
    # K-accumulation loop is exercised too
    out_tiled = jax.block_until_ready(
        gcn_forward(x, adj, params, dropout_p, kdrop,
                    force_tiled=True, tile_cap=(128, 128)))

    # reference with the same dropout mask
    keep = jax.random.uniform(kdrop, (N, nhid)) >= dropout_p
    drop_mask = keep.astype(jnp.float32) / (1.0 - dropout_p)
    ref = gcn_reference(x, adj, params, drop_mask)

    for out in (out_fused, out_tiled):
        assert out.shape == (N, nclass)
        assert bool(jnp.all(jnp.isfinite(out)))
        rowsum = jnp.sum(jnp.exp(out), axis=1)      # log_softmax rows exp-sum to 1
        assert bool(jnp.all(jnp.abs(rowsum - 1.0) < 1e-4))
        assert float(jnp.max(jnp.abs(out - ref))) < 0.15
    assert float(jnp.max(jnp.abs(out_fused - out_tiled))) < 2e-2

    print("KERNEL_OK")
</pallas_src>

<mosaic_0001>
module attributes {stable_mosaic.version = 11 : i64} {
  func.func @_gcn_fused_kernel(%arg0: i32, %arg1: memref<256x256xbf16, #tpu.memory_space<vmem>>, %arg2: memref<256x32xbf16, #tpu.memory_space<vmem>>, %arg3: memref<256x1xf32, #tpu.memory_space<vmem>>, %arg4: memref<256x128xbf16, #tpu.memory_space<vmem>>, %arg5: memref<32x128xf32, #tpu.memory_space<vmem>>, %arg6: memref<32x128xf32, #tpu.memory_space<vmem>>, %arg7: memref<1x128xf32, #tpu.memory_space<vmem>>, %arg8: memref<128x128xf32, #tpu.memory_space<vmem>>, %arg9: memref<128x128xf32, #tpu.memory_space<vmem>>, %arg10: memref<1x128xf32, #tpu.memory_space<vmem>>, %arg11: memref<128x128xf32, #tpu.memory_space<vmem>>, %arg12: memref<1x128xf32, #tpu.memory_space<vmem>>, %arg13: memref<256x128xf32, #tpu.memory_space<vmem>>) attributes {dimension_semantics = [#tpu.dimension_semantics<arbitrary>], iteration_bounds = array<i64: 1>, scalar_prefetch = 0 : i64, scratch_operands = 0 : i64, tpu.core_type = #tpu.core_type<tc>, window_params = [{pipeline_mode = #tpu.pipeline_mode<synchronous>, transform_indices = @transform_0, window_bounds = array<i64: 256, 256>}, {pipeline_mode = #tpu.pipeline_mode<synchronous>, transform_indices = @transform_1, window_bounds = array<i64: 256, 32>}, {pipeline_mode = #tpu.pipeline_mode<synchronous>, transform_indices = @transform_2, window_bounds = array<i64: 256, 1>}, {pipeline_mode = #tpu.pipeline_mode<synchronous>, transform_indices = @transform_3, window_bounds = array<i64: 256, 128>}, {pipeline_mode = #tpu.pipeline_mode<synchronous>, transform_indices = @transform_4, window_bounds = array<i64: 32, 128>}, {pipeline_mode = #tpu.pipeline_mode<synchronous>, transform_indices = @transform_5, window_bounds = array<i64: 32, 128>}, {pipeline_mode = #tpu.pipeline_mode<synchronous>, transform_indices = @transform_6, window_bounds = array<i64: 1, 128>}, {pipeline_mode = #tpu.pipeline_mode<synchronous>, transform_indices = @transform_7, window_bounds = array<i64: 128, 128>}, {pipeline_mode = #tpu.pipeline_mode<synchronous>, transform_indices = @transform_8, window_bounds = array<i64: 128, 128>}, {pipeline_mode = #tpu.pipeline_mode<synchronous>, transform_indices = @transform_9, window_bounds = array<i64: 1, 128>}, {pipeline_mode = #tpu.pipeline_mode<synchronous>, transform_indices = @transform_10, window_bounds = array<i64: 128, 128>}, {pipeline_mode = #tpu.pipeline_mode<synchronous>, transform_indices = @transform_11, window_bounds = array<i64: 1, 128>}, {pipeline_mode = #tpu.pipeline_mode<synchronous>, transform_indices = @transform_12, window_bounds = array<i64: 256, 128>}]} {
    %c0 = arith.constant 0 : index
    %c0_0 = arith.constant 0 : index
    %0 = vector.load %arg1[%c0, %c0_0] : memref<256x256xbf16, #tpu.memory_space<vmem>>, vector<256x256xbf16>
    %c0_1 = arith.constant 0 : index
    %c0_2 = arith.constant 0 : index
    %1 = vector.load %arg2[%c0_1, %c0_2] : memref<256x32xbf16, #tpu.memory_space<vmem>>, vector<256x32xbf16>
    %c0_3 = arith.constant 0 : index
    %c0_4 = arith.constant 0 : index
    %2 = vector.load %arg3[%c0_3, %c0_4] : memref<256x1xf32, #tpu.memory_space<vmem>>, vector<256x1xf32>
    %cst = arith.constant dense<0.000000e+00> : vector<256x32xf32>
    %3 = tpu.matmul %0, %1, %cst {dimension_numbers = #tpu.dot_dimension_numbers<[1], [0], [0], [1], [0, 0, 1, 1], [], []>} : vector<256x256xbf16>, vector<256x32xbf16>, vector<256x32xf32> -> vector<256x32xf32>
    %4 = vector.broadcast %2 : vector<256x1xf32> to vector<256x32xf32>
    %5 = arith.mulf %3, %4 : vector<256x32xf32>
    %6 = arith.extf %1 : vector<256x32xbf16> to vector<256x32xf32>
    %c0_5 = arith.constant 0 : index
    %c0_6 = arith.constant 0 : index
    %7 = vector.load %arg5[%c0_5, %c0_6] : memref<32x128xf32, #tpu.memory_space<vmem>>, vector<32x128xf32>
    %cst_7 = arith.constant dense<0.000000e+00> : vector<256x128xf32>
    %8 = tpu.matmul %6, %7, %cst_7 {dimension_numbers = #tpu.dot_dimension_numbers<[1], [0], [0], [1], [0, 0, 1, 1], [], []>} : vector<256x32xf32>, vector<32x128xf32>, vector<256x128xf32> -> vector<256x128xf32>
    %c0_8 = arith.constant 0 : index
    %c0_9 = arith.constant 0 : index
    %9 = vector.load %arg6[%c0_8, %c0_9] : memref<32x128xf32, #tpu.memory_space<vmem>>, vector<32x128xf32>
    %cst_10 = arith.constant dense<0.000000e+00> : vector<256x128xf32>
    %10 = tpu.matmul %5, %9, %cst_10 {dimension_numbers = #tpu.dot_dimension_numbers<[1], [0], [0], [1], [0, 0, 1, 1], [], []>} : vector<256x32xf32>, vector<32x128xf32>, vector<256x128xf32> -> vector<256x128xf32>
    %11 = arith.addf %8, %10 : vector<256x128xf32>
    %c0_11 = arith.constant 0 : index
    %c0_12 = arith.constant 0 : index
    %12 = vector.load %arg7[%c0_11, %c0_12] : memref<1x128xf32, #tpu.memory_space<vmem>>, vector<1x128xf32>
    %13 = vector.broadcast %12 : vector<1x128xf32> to vector<256x128xf32>
    %14 = arith.addf %11, %13 : vector<256x128xf32>
    %cst_13 = arith.constant 0.000000e+00 : f32
    %15 = vector.broadcast %cst_13 : f32 to vector<256x128xf32>
    %16 = arith.maximumf %14, %15 : vector<256x128xf32>
    %c0_14 = arith.constant 0 : index
    %c0_15 = arith.constant 0 : index
    %17 = vector.load %arg4[%c0_14, %c0_15] : memref<256x128xbf16, #tpu.memory_space<vmem>>, vector<256x128xbf16>
    %18 = arith.extf %17 : vector<256x128xbf16> to vector<256x128xf32>
    %19 = arith.mulf %16, %18 : vector<256x128xf32>
    %20 = arith.truncf %19 : vector<256x128xf32> to vector<256x128xbf16>
    %cst_16 = arith.constant dense<0.000000e+00> : vector<256x128xf32>
    %21 = tpu.matmul %0, %20, %cst_16 {dimension_numbers = #tpu.dot_dimension_numbers<[1], [0], [0], [1], [0, 0, 1, 1], [], []>} : vector<256x256xbf16>, vector<256x128xbf16>, vector<256x128xf32> -> vector<256x128xf32>
    %22 = vector.broadcast %2 : vector<256x1xf32> to vector<256x128xf32>
    %23 = arith.mulf %21, %22 : vector<256x128xf32>
    %24 = arith.extf %20 : vector<256x128xbf16> to vector<256x128xf32>
    %c0_17 = arith.constant 0 : index
    %c0_18 = arith.constant 0 : index
    %25 = vector.load %arg8[%c0_17, %c0_18] : memref<128x128xf32, #tpu.memory_space<vmem>>, vector<128x128xf32>
    %cst_19 = arith.constant dense<0.000000e+00> : vector<256x128xf32>
    %26 = tpu.matmul %24, %25, %cst_19 {dimension_numbers = #tpu.dot_dimension_numbers<[1], [0], [0], [1], [0, 0, 1, 1], [], []>} : vector<256x128xf32>, vector<128x128xf32>, vector<256x128xf32> -> vector<256x128xf32>
    %c0_20 = arith.constant 0 : index
    %c0_21 = arith.constant 0 : index
    %27 = vector.load %arg9[%c0_20, %c0_21] : memref<128x128xf32, #tpu.memory_space<vmem>>, vector<128x128xf32>
    %cst_22 = arith.constant dense<0.000000e+00> : vector<256x128xf32>
    %28 = tpu.matmul %23, %27, %cst_22 {dimension_numbers = #tpu.dot_dimension_numbers<[1], [0], [0], [1], [0, 0, 1, 1], [], []>} : vector<256x128xf32>, vector<128x128xf32>, vector<256x128xf32> -> vector<256x128xf32>
    %29 = arith.addf %26, %28 : vector<256x128xf32>
    %c0_23 = arith.constant 0 : index
    %c0_24 = arith.constant 0 : index
    %30 = vector.load %arg10[%c0_23, %c0_24] : memref<1x128xf32, #tpu.memory_space<vmem>>, vector<1x128xf32>
    %31 = vector.broadcast %30 : vector<1x128xf32> to vector<256x128xf32>
    %32 = arith.addf %29, %31 : vector<256x128xf32>
    %c0_25 = arith.constant 0 : index
    %c0_26 = arith.constant 0 : index
    %33 = vector.load %arg11[%c0_25, %c0_26] : memref<128x128xf32, #tpu.memory_space<vmem>>, vector<128x128xf32>
    %cst_27 = arith.constant dense<0.000000e+00> : vector<256x128xf32>
    %34 = tpu.matmul %32, %33, %cst_27 {dimension_numbers = #tpu.dot_dimension_numbers<[1], [0], [0], [1], [0, 0, 1, 1], [], []>} : vector<256x128xf32>, vector<128x128xf32>, vector<256x128xf32> -> vector<256x128xf32>
    %c0_28 = arith.constant 0 : index
    %c0_29 = arith.constant 0 : index
    %35 = vector.load %arg12[%c0_28, %c0_29] : memref<1x128xf32, #tpu.memory_space<vmem>>, vector<1x128xf32>
    %36 = vector.broadcast %35 : vector<1x128xf32> to vector<256x128xf32>
    %37 = arith.addf %34, %36 : vector<256x128xf32>
    %38 = tpu.iota {dimensions = array<i32: 1>} : vector<256x128xi32>
    %c8_i32 = arith.constant 8 : i32
    %39 = vector.broadcast %c8_i32 : i32 to vector<256x128xi32>
    %40 = arith.cmpi slt, %38, %39 : vector<256x128xi32>
    %cst_30 = arith.constant -1.000000e+30 : f32
    %41 = vector.broadcast %cst_30 : f32 to vector<256x128xf32>
    %42 = arith.select %40, %37, %41 : vector<256x128xi1>, vector<256x128xf32>
    %cst_31 = arith.constant dense<0xFF800000> : vector<256xf32>
    %43 = vector.multi_reduction <maximumf>, %42, %cst_31 [1] : vector<256x128xf32> to vector<256xf32>
    %44 = vector.shape_cast %43 : vector<256xf32> to vector<256x1xf32>
    %45 = vector.broadcast %44 : vector<256x1xf32> to vector<256x128xf32>
    %46 = arith.subf %42, %45 : vector<256x128xf32>
    %47 = math.exp %46 : vector<256x128xf32>
    %cst_32 = arith.constant dense<0.000000e+00> : vector<256xf32>
    %48 = vector.multi_reduction <add>, %47, %cst_32 [1] : vector<256x128xf32> to vector<256xf32>
    %49 = vector.shape_cast %48 : vector<256xf32> to vector<256x1xf32>
    %50 = math.log %49 : vector<256x1xf32>
    %51 = vector.broadcast %50 : vector<256x1xf32> to vector<256x128xf32>
    %52 = arith.subf %46, %51 : vector<256x128xf32>
    %c0_33 = arith.constant 0 : index
    %c0_34 = arith.constant 0 : index
    %53 = vector.load %arg13[%c0_33, %c0_34] : memref<256x128xf32, #tpu.memory_space<vmem>>, vector<256x128xf32>
    tpu.vector_store %arg13[%c0_33, %c0_34], %52 {strides = array<i32>} : memref<256x128xf32, #tpu.memory_space<vmem>>, vector<256x128xf32>,
    return
  }
  func.func @transform_0(%arg0: i32) -> (i32, i32) {
    %c0_i32 = arith.constant 0 : i32
    %c0_i32_0 = arith.constant 0 : i32
    %c0_i32_1 = arith.constant 0 : i32
    return %c0_i32, %c0_i32_0 : i32, i32
  }
  func.func @transform_1(%arg0: i32) -> (i32, i32) {
    %c0_i32 = arith.constant 0 : i32
    %c0_i32_0 = arith.constant 0 : i32
    %c0_i32_1 = arith.constant 0 : i32
    return %c0_i32, %c0_i32_0 : i32, i32
  }
  func.func @transform_2(%arg0: i32) -> (i32, i32) {
    %c0_i32 = arith.constant 0 : i32
    %c0_i32_0 = arith.constant 0 : i32
    %c0_i32_1 = arith.constant 0 : i32
    return %c0_i32, %c0_i32_0 : i32, i32
  }
  func.func @transform_3(%arg0: i32) -> (i32, i32) {
    %c0_i32 = arith.constant 0 : i32
    %c0_i32_0 = arith.constant 0 : i32
    %c0_i32_1 = arith.constant 0 : i32
    return %c0_i32, %c0_i32_0 : i32, i32
  }
  func.func @transform_4(%arg0: i32) -> (i32, i32) {
    %c0_i32 = arith.constant 0 : i32
    %c0_i32_0 = arith.constant 0 : i32
    %c0_i32_1 = arith.constant 0 : i32
    return %c0_i32, %c0_i32_0 : i32, i32
  }
  func.func @transform_5(%arg0: i32) -> (i32, i32) {
    %c0_i32 = arith.constant 0 : i32
    %c0_i32_0 = arith.constant 0 : i32
    %c0_i32_1 = arith.constant 0 : i32
    return %c0_i32, %c0_i32_0 : i32, i32
  }
  func.func @transform_6(%arg0: i32) -> (i32, i32) {
    %c0_i32 = arith.constant 0 : i32
    %c0_i32_0 = arith.constant 0 : i32
    %c0_i32_1 = arith.constant 0 : i32
    return %c0_i32, %c0_i32_0 : i32, i32
  }
  func.func @transform_7(%arg0: i32) -> (i32, i32) {
    %c0_i32 = arith.constant 0 : i32
    %c0_i32_0 = arith.constant 0 : i32
    %c0_i32_1 = arith.constant 0 : i32
    return %c0_i32, %c0_i32_0 : i32, i32
  }
  func.func @transform_8(%arg0: i32) -> (i32, i32) {
    %c0_i32 = arith.constant 0 : i32
    %c0_i32_0 = arith.constant 0 : i32
    %c0_i32_1 = arith.constant 0 : i32
    return %c0_i32, %c0_i32_0 : i32, i32
  }
  func.func @transform_9(%arg0: i32) -> (i32, i32) {
    %c0_i32 = arith.constant 0 : i32
    %c0_i32_0 = arith.constant 0 : i32
    %c0_i32_1 = arith.constant 0 : i32
    return %c0_i32, %c0_i32_0 : i32, i32
  }
  func.func @transform_10(%arg0: i32) -> (i32, i32) {
    %c0_i32 = arith.constant 0 : i32
    %c0_i32_0 = arith.constant 0 : i32
    %c0_i32_1 = arith.constant 0 : i32
    return %c0_i32, %c0_i32_0 : i32, i32
  }
  func.func @transform_11(%arg0: i32) -> (i32, i32) {
    %c0_i32 = arith.constant 0 : i32
    %c0_i32_0 = arith.constant 0 : i32
    %c0_i32_1 = arith.constant 0 : i32
    return %c0_i32, %c0_i32_0 : i32, i32
  }
  func.func @transform_12(%arg0: i32) -> (i32, i32) {
    %c0_i32 = arith.constant 0 : i32
    %c0_i32_0 = arith.constant 0 : i32
    %c0_i32_1 = arith.constant 0 : i32
    return %c0_i32, %c0_i32_0 : i32, i32
  }
}

</mosaic_0001>

<llo_original>
// kernel: tpu_custom_call.1
$region0: #{tpu_custom_call.1}
  #allocation0 [shape = 'u32[]', space=smem, size = 0x4, offset = 0x4, fixed_abs, tag = 'smem constant byte address 0x4 - core index']
  #allocation1 [shape = 'u32[72,128]{1,0:T(1,128)}', space=vmem, size = 0x9000, scoped, tag = 'internal scratch']
  %s0 = inlined_call_operand.vmem [shape: bf16[256,256], index: 0, kind: input, shape index: {}]
  %s1 = inlined_call_operand.vmem [shape: bf16[256,32], index: 1, kind: input, shape index: {}]
  %s2 = inlined_call_operand.vmem [shape: f32[256,1], index: 2, kind: input, shape index: {}]
  %s3 = inlined_call_operand.vmem [shape: bf16[256,128], index: 3, kind: input, shape index: {}]
  %s4 = inlined_call_operand.vmem [shape: f32[32,128], index: 4, kind: input, shape index: {}]
  %s5 = inlined_call_operand.hbm [shape: f32[32,128], index: 5, kind: input, shape index: {}]
  %s6 = inlined_call_operand.vmem [shape: f32[1,128], index: 6, kind: input, shape index: {}]
  %s7 = inlined_call_operand.hbm [shape: f32[128,128], index: 7, kind: input, shape index: {}]
  %s8 = inlined_call_operand.hbm [shape: f32[128,128], index: 8, kind: input, shape index: {}]
  %s9 = inlined_call_operand.vmem [shape: f32[1,128], index: 9, kind: input, shape index: {}]
  %s10 = inlined_call_operand.hbm [shape: f32[128,128], index: 10, kind: input, shape index: {}]
  %s11 = inlined_call_operand.vmem [shape: f32[1,128], index: 11, kind: input, shape index: {}]
  %s12 = inlined_call_operand.hbm [shape: f32[256,128], index: 12, kind: output, shape index: {}]
  %s13 = sld [smem:[#allocation0]]
  $region74: #{tpu_custom_call.1} parent=0
    _
  %s15 = ssub.s32 1, %s13
  %s16 = scalar_select 0, %s15, %s13
  $region1: #{tpu_custom_call.1} parent=0
    #allocation2 [shape = 'u8[16384]{0}', space=vmem, size = 0x4000, scoped, tag = 'input window, operand 5, single buffered']
    #allocation3 [shape = 's32[1]{0}', space=sflag, size = 0x4, scoped, tag = 'scoped memory for tpu_custom_call.1']
    #allocation4 [shape = 's32[1]{0}', space=sflag, size = 0x4, scoped, tag = 'scoped memory for tpu_custom_call.1']
    #allocation5 [shape = 'u8[65536]{0}', space=vmem, size = 0x10000, scoped, tag = 'input window, operand 7, single buffered']
    #allocation6 [shape = 's32[1]{0}', space=sflag, size = 0x4, scoped, tag = 'scoped memory for tpu_custom_call.1']
    #allocation7 [shape = 'u8[65536]{0}', space=vmem, size = 0x10000, scoped, tag = 'input window, operand 8, single buffered']
    #allocation8 [shape = 'u8[65536]{0}', space=vmem, size = 0x10000, scoped, tag = 'input window, operand 10, single buffered']
    #allocation9 [shape = 's32[1]{0}', space=sflag, size = 0x4, scoped, tag = 'scoped memory for tpu_custom_call.1']
    #allocation10 [shape = 'u8[131072]{0}', space=vmem, size = 0x20000, scoped, tag = 'output window, operand 0, single buffered']
    %17 = vsyncpa [#allocation3], 0
    %18 = vsyncpa [#allocation6], 0
    %19 = vsyncpa [#allocation9], 0
    %20 = vsyncpa [#allocation4], 0
    // Predicated region
    $region2: #{tpu_custom_call.1} parent=1 // pred_check
      _
    $region3: #{tpu_custom_call.1} parent=1 // pred_check_branch
      %22 = sbr.rel (0) target = $region5
    $region4: #{tpu_custom_call.1} parent=1 // pred_region
      _
    $region5: #{tpu_custom_call.1} parent=1 // pred_fallthru
      _
    // Predicated region
    $region6: #{tpu_custom_call.1} parent=1 // pred_check
      _
    $region7: #{tpu_custom_call.1} parent=1 // pred_check_branch
      %24 = sbr.rel (0) target = $region9
    $region8: #{tpu_custom_call.1} parent=1 // pred_region
      _
    $region9: #{tpu_custom_call.1} parent=1 // pred_fallthru
      _
    // Predicated region
    $region10: #{tpu_custom_call.1} parent=1 // pred_check
      _
    $region11: #{tpu_custom_call.1} parent=1 // pred_check_branch
      %26 = sbr.rel (0) target = $region13
    $region12: #{tpu_custom_call.1} parent=1 // pred_region
      _
    $region13: #{tpu_custom_call.1} parent=1 // pred_fallthru
      _
    // Predicated region
    $region14: #{tpu_custom_call.1} parent=1 // pred_check
      _
    $region15: #{tpu_custom_call.1} parent=1 // pred_check_branch
      %28 = sbr.rel (0) target = $region17
    $region16: #{tpu_custom_call.1} parent=1 // pred_region
      _
    $region17: #{tpu_custom_call.1} parent=1 // pred_fallthru
      _
    // Predicated region
    $region18: #{tpu_custom_call.1} parent=1 // pred_check
      _
    $region19: #{tpu_custom_call.1} parent=1 // pred_check_branch
      %30 = sbr.rel (0) target = $region21
    $region20: #{tpu_custom_call.1} parent=1 // pred_region
      _
    $region21: #{tpu_custom_call.1} parent=1 // pred_fallthru
      _
    // Predicated region
    $region22: #{tpu_custom_call.1} parent=1 // pred_check
      _
    $region23: #{tpu_custom_call.1} parent=1 // pred_check_branch
      %32 = sbr.rel (0) target = $region25
    $region24: #{tpu_custom_call.1} parent=1 // pred_region
      %34 = vsyncadd [#allocation3], 0
      %s35 = sshll.u32 %s5, 4
      %s36 = int_to_ptr.hbm [resolvable:$true] %s35
      %s37 = sshll.u32 [#allocation2], 4
      %s38 = int_to_ptr.vmem [resolvable:$true] %s37
      %43 = dma.hbm_to_vmem [thread:$0]  %s36, 512, %s38, [#allocation3], 128, 128, 8
    $region25: #{tpu_custom_call.1} parent=1 // pred_fallthru
      _
    // Predicated region
    $region26: #{tpu_custom_call.1} parent=1 // pred_check
      _
    $region27: #{tpu_custom_call.1} parent=1 // pred_check_branch
      %45 = sbr.rel (0) target = $region29
    $region28: #{tpu_custom_call.1} parent=1 // pred_region
      _
    $region29: #{tpu_custom_call.1} parent=1 // pred_fallthru
      _
    // Predicated region
    $region30: #{tpu_custom_call.1} parent=1 // pred_check
      _
    $region31: #{tpu_custom_call.1} parent=1 // pred_check_branch
      %47 = sbr.rel (0) target = $region33
    $region32: #{tpu_custom_call.1} parent=1 // pred_region
      %49 = vsyncadd [#allocation6], 0
      %s50 = sshll.u32 %s7, 4
      %s51 = int_to_ptr.hbm [resolvable:$true] %s50
      %s52 = sshll.u32 [#allocation5], 4
      %s53 = int_to_ptr.vmem [resolvable:$true] %s52
      %58 = dma.hbm_to_vmem [thread:$0]  %s51, 2048, %s53, [#allocation6], 128, 128, 8
    $region33: #{tpu_custom_call.1} parent=1 // pred_fallthru
      _
    // Predicated region
    $region34: #{tpu_custom_call.1} parent=1 // pred_check
      _
    $region35: #{tpu_custom_call.1} parent=1 // pred_check_branch
      %60 = sbr.rel (0) target = $region37
    $region36: #{tpu_custom_call.1} parent=1 // pred_region
      %62 = vsyncadd [#allocation6], 0
      %s63 = sshll.u32 %s8, 4
      %s64 = int_to_ptr.hbm [resolvable:$true] %s63
      %s65 = sshll.u32 [#allocation7], 4
      %s66 = int_to_ptr.vmem [resolvable:$true] %s65
      %71 = dma.hbm_to_vmem [thread:$0]  %s64, 2048, %s66, [#allocation6], 128, 128, 8
    $region37: #{tpu_custom_call.1} parent=1 // pred_fallthru
      _
    // Predicated region
    $region38: #{tpu_custom_call.1} parent=1 // pred_check
      _
    $region39: #{tpu_custom_call.1} parent=1 // pred_check_branch
      %73 = sbr.rel (0) target = $region41
    $region40: #{tpu_custom_call.1} parent=1 // pred_region
      _
    $region41: #{tpu_custom_call.1} parent=1 // pred_fallthru
      _
    // Predicated region
    $region42: #{tpu_custom_call.1} parent=1 // pred_check
      _
    $region43: #{tpu_custom_call.1} parent=1 // pred_check_branch
      %75 = sbr.rel (0) target = $region45
    $region44: #{tpu_custom_call.1} parent=1 // pred_region
      %77 = vsyncadd [#allocation9], 0
      %s78 = sshll.u32 %s10, 4
      %s79 = int_to_ptr.hbm [resolvable:$true] %s78
      %s80 = sshll.u32 [#allocation8], 4
      %s81 = int_to_ptr.vmem [resolvable:$true] %s80
      %86 = dma.hbm_to_vmem [thread:$0]  %s79, 2048, %s81, [#allocation9], 128, 128, 8
    $region45: #{tpu_custom_call.1} parent=1 // pred_fallthru
      _
    // Predicated region
    $region46: #{tpu_custom_call.1} parent=1 // pred_check
      _
    $region47: #{tpu_custom_call.1} parent=1 // pred_check_branch
      %88 = sbr.rel (0) target = $region49
    $region48: #{tpu_custom_call.1} parent=1 // pred_region
      _
    $region49: #{tpu_custom_call.1} parent=1 // pred_fallthru
      _
    // Predicated region
    $region50: #{tpu_custom_call.1} parent=1 // pred_check
      _
    $region51: #{tpu_custom_call.1} parent=1 // pred_check_branch
      %90 = sbr.rel (0) target = $region53
    $region52: #{tpu_custom_call.1} parent=1 // pred_region
      %92 = dma.done [#allocation3], 512
    $region53: #{tpu_custom_call.1} parent=1 // pred_fallthru
      _
    // Predicated region
    $region54: #{tpu_custom_call.1} parent=1 // pred_check
      _
    $region55: #{tpu_custom_call.1} parent=1 // pred_check_branch
      %94 = sbr.rel (0) target = $region57
    $region56: #{tpu_custom_call.1} parent=1 // pred_region
      %96 = dma.done [#allocation6], 2048
    $region57: #{tpu_custom_call.1} parent=1 // pred_fallthru
      _
    // Predicated region
    $region58: #{tpu_custom_call.1} parent=1 // pred_check
      _
    $region59: #{tpu_custom_call.1} parent=1 // pred_check_branch
      %98 = sbr.rel (0) target = $region61
    $region60: #{tpu_custom_call.1} parent=1 // pred_region
      %100 = dma.done [#allocation6], 2048
    $region61: #{tpu_custom_call.1} parent=1 // pred_fallthru
      _
    // Predicated region
    $region62: #{tpu_custom_call.1} parent=1 // pred_check
      _
    $region63: #{tpu_custom_call.1} parent=1 // pred_check_branch
      %102 = sbr.rel (0) target = $region65
    $region64: #{tpu_custom_call.1} parent=1 // pred_region
      %104 = dma.done [#allocation9], 2048
    $region65: #{tpu_custom_call.1} parent=1 // pred_fallthru
      _
    %v105 = vld [vmem:[%s0] sm:$0xff]
    %v106 = vld [vmem:[%s0 + $0x8] sm:$0xff]
    %v107 = vld [vmem:[%s0 + $0x10] sm:$0xff]
    %v108 = vld [vmem:[%s0 + $0x18] sm:$0xff]
    %v109 = vld [vmem:[%s0 + $0x20] sm:$0xff]
    %v110 = vld [vmem:[%s0 + $0x28] sm:$0xff]
    %v111 = vld [vmem:[%s0 + $0x30] sm:$0xff]
    %v112 = vld [vmem:[%s0 + $0x38] sm:$0xff]
    %v113 = vld [vmem:[%s0 + $0x40] sm:$0xff]
    %v114 = vld [vmem:[%s0 + $0x48] sm:$0xff]
    %v115 = vld [vmem:[%s0 + $0x50] sm:$0xff]
    %v116 = vld [vmem:[%s0 + $0x58] sm:$0xff]
    %v117 = vld [vmem:[%s0 + $0x60] sm:$0xff]
    %v118 = vld [vmem:[%s0 + $0x68] sm:$0xff]
    %v119 = vld [vmem:[%s0 + $0x70] sm:$0xff]
    %v120 = vld [vmem:[%s0 + $0x78] sm:$0xff]
    %v121 = vld [vmem:[%s0 + $0x80] sm:$0xff]
    %v122 = vld [vmem:[%s0 + $0x88] sm:$0xff]
    %v123 = vld [vmem:[%s0 + $0x90] sm:$0xff]
    %v124 = vld [vmem:[%s0 + $0x98] sm:$0xff]
    %v125 = vld [vmem:[%s0 + $0xa0] sm:$0xff]
    %v126 = vld [vmem:[%s0 + $0xa8] sm:$0xff]
    %v127 = vld [vmem:[%s0 + $0xb0] sm:$0xff]
    %v128 = vld [vmem:[%s0 + $0xb8] sm:$0xff]
    %v129 = vld [vmem:[%s0 + $0xc0] sm:$0xff]
    %v130 = vld [vmem:[%s0 + $0xc8] sm:$0xff]
    %v131 = vld [vmem:[%s0 + $0xd0] sm:$0xff]
    %v132 = vld [vmem:[%s0 + $0xd8] sm:$0xff]
    %v133 = vld [vmem:[%s0 + $0xe0] sm:$0xff]
    %v134 = vld [vmem:[%s0 + $0xe8] sm:$0xff]
    %v135 = vld [vmem:[%s0 + $0xf0] sm:$0xff]
    %v136 = vld [vmem:[%s0 + $0xf8] sm:$0xff]
    %v137 = vld [vmem:[%s1] sm:$0xf]
    %v138 = vld [vmem:[%s1 + $0x4] sm:$0xf]
    %v139 = vld [vmem:[%s1 + $0x8] sm:$0xf]
    %v140 = vld [vmem:[%s1 + $0xc] sm:$0xf]
    %v141 = vld [vmem:[%s1 + $0x10] sm:$0xf]
    %v142 = vld [vmem:[%s1 + $0x14] sm:$0xf]
    %v143 = vld [vmem:[%s1 + $0x18] sm:$0xf]
    %v144 = vld [vmem:[%s1 + $0x1c] sm:$0xf]
    %v145 = vld [vmem:[%s1 + $0x20] sm:$0xf]
    %v146 = vld [vmem:[%s1 + $0x24] sm:$0xf]
    %v147 = vld [vmem:[%s1 + $0x28] sm:$0xf]
    %v148 = vld [vmem:[%s1 + $0x2c] sm:$0xf]
    %v149 = vld [vmem:[%s1 + $0x30] sm:$0xf]
    %v150 = vld [vmem:[%s1 + $0x34] sm:$0xf]
    %v151 = vld [vmem:[%s1 + $0x38] sm:$0xf]
    %v152 = vld [vmem:[%s1 + $0x3c] sm:$0xf]
    %v153 = vld [vmem:[%s1 + $0x40] sm:$0xf]
    %v154 = vld [vmem:[%s1 + $0x44] sm:$0xf]
    %v155 = vld [vmem:[%s1 + $0x48] sm:$0xf]
    %v156 = vld [vmem:[%s1 + $0x4c] sm:$0xf]
    %v157 = vld [vmem:[%s1 + $0x50] sm:$0xf]
    %v158 = vld [vmem:[%s1 + $0x54] sm:$0xf]
    %v159 = vld [vmem:[%s1 + $0x58] sm:$0xf]
    %v160 = vld [vmem:[%s1 + $0x5c] sm:$0xf]
    %v161 = vld [vmem:[%s1 + $0x60] sm:$0xf]
    %v162 = vld [vmem:[%s1 + $0x64] sm:$0xf]
    %v163 = vld [vmem:[%s1 + $0x68] sm:$0xf]
    %v164 = vld [vmem:[%s1 + $0x6c] sm:$0xf]
    %v165 = vld [vmem:[%s1 + $0x70] sm:$0xf]
    %v166 = vld [vmem:[%s1 + $0x74] sm:$0xf]
    %v167 = vld [vmem:[%s1 + $0x78] sm:$0xf]
    %v168 = vld [vmem:[%s1 + $0x7c] sm:$0xf]
    %v169 = vld [vmem:[%s2] sm:$0xff]
    %v170 = vld [vmem:[%s2 + $0x8] sm:$0xff]
    %v171 = vld [vmem:[%s2 + $0x10] sm:$0xff]
    %v172 = vld [vmem:[%s2 + $0x18] sm:$0xff]
    %v173 = vld [vmem:[%s2 + $0x20] sm:$0xff]
    %v174 = vld [vmem:[%s2 + $0x28] sm:$0xff]
    %v175 = vld [vmem:[%s2 + $0x30] sm:$0xff]
    %v176 = vld [vmem:[%s2 + $0x38] sm:$0xff]
    %v177 = vld [vmem:[%s2 + $0x40] sm:$0xff]
    %v178 = vld [vmem:[%s2 + $0x48] sm:$0xff]
    %v179 = vld [vmem:[%s2 + $0x50] sm:$0xff]
    %v180 = vld [vmem:[%s2 + $0x58] sm:$0xff]
    %v181 = vld [vmem:[%s2 + $0x60] sm:$0xff]
    %v182 = vld [vmem:[%s2 + $0x68] sm:$0xff]
    %v183 = vld [vmem:[%s2 + $0x70] sm:$0xff]
    %v184 = vld [vmem:[%s2 + $0x78] sm:$0xff]
    %v185 = vld [vmem:[%s2 + $0x80] sm:$0xff]
    %v186 = vld [vmem:[%s2 + $0x88] sm:$0xff]
    %v187 = vld [vmem:[%s2 + $0x90] sm:$0xff]
    %v188 = vld [vmem:[%s2 + $0x98] sm:$0xff]
    %v189 = vld [vmem:[%s2 + $0xa0] sm:$0xff]
    %v190 = vld [vmem:[%s2 + $0xa8] sm:$0xff]
    %v191 = vld [vmem:[%s2 + $0xb0] sm:$0xff]
    %v192 = vld [vmem:[%s2 + $0xb8] sm:$0xff]
    %v193 = vld [vmem:[%s2 + $0xc0] sm:$0xff]
    %v194 = vld [vmem:[%s2 + $0xc8] sm:$0xff]
    %v195 = vld [vmem:[%s2 + $0xd0] sm:$0xff]
    %v196 = vld [vmem:[%s2 + $0xd8] sm:$0xff]
    %v197 = vld [vmem:[%s2 + $0xe0] sm:$0xff]
    %v198 = vld [vmem:[%s2 + $0xe8] sm:$0xff]
    %v199 = vld [vmem:[%s2 + $0xf0] sm:$0xff]
    %v200 = vld [vmem:[%s2 + $0xf8] sm:$0xff]
    %v233 = vunpack.c.l.b16 %v105
    %v234 = vunpack.c.h.b16 %v105
    %v235 = vunpack.c.l.b16 %v106
    %v236 = vunpack.c.h.b16 %v106
    %v237 = vunpack.c.l.b16 %v107
    %v238 = vunpack.c.h.b16 %v107
    %v239 = vunpack.c.l.b16 %v108
    %v240 = vunpack.c.h.b16 %v108
    %v241 = vunpack.c.l.b16 %v109
    %v242 = vunpack.c.h.b16 %v109
    %v243 = vunpack.c.l.b16 %v110
    %v244 = vunpack.c.h.b16 %v110
    %v245 = vunpack.c.l.b16 %v111
    %v246 = vunpack.c.h.b16 %v111
    %v247 = vunpack.c.l.b16 %v112
    %v248 = vunpack.c.h.b16 %v112
    %v249 = vunpack.c.l.b16 %v113
    %v250 = vunpack.c.h.b16 %v113
    %v251 = vunpack.c.l.b16 %v114
    %v252 = vunpack.c.h.b16 %v114
    %v253 = vunpack.c.l.b16 %v115
    %v254 = vunpack.c.h.b16 %v115
    %v255 = vunpack.c.l.b16 %v116
    %v256 = vunpack.c.h.b16 %v116
    %v257 = vunpack.c.l.b16 %v117
    %v258 = vunpack.c.h.b16 %v117
    %v259 = vunpack.c.l.b16 %v118
    %v260 = vunpack.c.h.b16 %v118
    %v261 = vunpack.c.l.b16 %v119
    %v262 = vunpack.c.h.b16 %v119
    %v263 = vunpack.c.l.b16 %v120
    %v264 = vunpack.c.h.b16 %v120
    %v265 = vunpack.c.l.b16 %v121
    %v266 = vunpack.c.h.b16 %v121
    %v267 = vunpack.c.l.b16 %v122
    %v268 = vunpack.c.h.b16 %v122
    %v269 = vunpack.c.l.b16 %v123
    %v270 = vunpack.c.h.b16 %v123
    %v271 = vunpack.c.l.b16 %v124
    %v272 = vunpack.c.h.b16 %v124
    %v273 = vunpack.c.l.b16 %v125
    %v274 = vunpack.c.h.b16 %v125
    %v275 = vunpack.c.l.b16 %v126
    %v276 = vunpack.c.h.b16 %v126
    %v277 = vunpack.c.l.b16 %v127
    %v278 = vunpack.c.h.b16 %v127
    %v279 = vunpack.c.l.b16 %v128
    %v280 = vunpack.c.h.b16 %v128
    %v281 = vunpack.c.l.b16 %v129
    %v282 = vunpack.c.h.b16 %v129
    %v283 = vunpack.c.l.b16 %v130
    %v284 = vunpack.c.h.b16 %v130
    %v285 = vunpack.c.l.b16 %v131
    %v286 = vunpack.c.h.b16 %v131
    %v287 = vunpack.c.l.b16 %v132
    %v288 = vunpack.c.h.b16 %v132
    %v289 = vunpack.c.l.b16 %v133
    %v290 = vunpack.c.h.b16 %v133
    %v291 = vunpack.c.l.b16 %v134
    %v292 = vunpack.c.h.b16 %v134
    %v293 = vunpack.c.l.b16 %v135
    %v294 = vunpack.c.h.b16 %v135
    %v295 = vunpack.c.l.b16 %v136
    %v296 = vunpack.c.h.b16 %v136
    %v297 = vpack.c.b16 %v235, %v233
    %v298 = vpack.c.b16 %v236, %v234
    %v299 = vpack.c.b16 %v239, %v237
    %v300 = vpack.c.b16 %v240, %v238
    %v301 = vpack.c.b16 %v243, %v241
    %v302 = vpack.c.b16 %v244, %v242
    %v303 = vpack.c.b16 %v247, %v245
    %v304 = vpack.c.b16 %v248, %v246
    %v305 = vpack.c.b16 %v251, %v249
    %v306 = vpack.c.b16 %v252, %v250
    %v307 = vpack.c.b16 %v255, %v253
    %v308 = vpack.c.b16 %v256, %v254
    %v309 = vpack.c.b16 %v259, %v257
    %v310 = vpack.c.b16 %v260, %v258
    %v311 = vpack.c.b16 %v263, %v261
    %v312 = vpack.c.b16 %v264, %v262
    %v313 = vpack.c.b16 %v267, %v265
    %v314 = vpack.c.b16 %v268, %v266
    %v315 = vpack.c.b16 %v271, %v269
    %v316 = vpack.c.b16 %v272, %v270
    %v317 = vpack.c.b16 %v275, %v273
    %v318 = vpack.c.b16 %v276, %v274
    %v319 = vpack.c.b16 %v279, %v277
    %v320 = vpack.c.b16 %v280, %v278
    %v321 = vpack.c.b16 %v283, %v281
    %v322 = vpack.c.b16 %v284, %v282
    %v323 = vpack.c.b16 %v287, %v285
    %v324 = vpack.c.b16 %v288, %v286
    %v325 = vpack.c.b16 %v291, %v289
    %v326 = vpack.c.b16 %v292, %v290
    %v327 = vpack.c.b16 %v295, %v293
    %v328 = vpack.c.b16 %v296, %v294
    %v393 = vunpack.c.l.b16 %v137
    %v394 = vunpack.c.l.b16 %v138
    %v395 = vunpack.c.l.b16 %v139
    %v396 = vunpack.c.l.b16 %v140
    %v397 = vunpack.c.l.b16 %v141
    %v398 = vunpack.c.l.b16 %v142
    %v399 = vunpack.c.l.b16 %v143
    %v400 = vunpack.c.l.b16 %v144
    %v401 = vunpack.c.l.b16 %v145
    %v402 = vunpack.c.l.b16 %v146
    %v403 = vunpack.c.l.b16 %v147
    %v404 = vunpack.c.l.b16 %v148
    %v405 = vunpack.c.l.b16 %v149
    %v406 = vunpack.c.l.b16 %v150
    %v407 = vunpack.c.l.b16 %v151
    %v408 = vunpack.c.l.b16 %v152
    %v409 = vunpack.c.l.b16 %v153
    %v410 = vunpack.c.l.b16 %v154
    %v411 = vunpack.c.l.b16 %v155
    %v412 = vunpack.c.l.b16 %v156
    %v413 = vunpack.c.l.b16 %v157
    %v414 = vunpack.c.l.b16 %v158
    %v415 = vunpack.c.l.b16 %v159
    %v416 = vunpack.c.l.b16 %v160
    %v417 = vunpack.c.l.b16 %v161
    %v418 = vunpack.c.l.b16 %v162
    %v419 = vunpack.c.l.b16 %v163
    %v420 = vunpack.c.l.b16 %v164
    %v421 = vunpack.c.l.b16 %v165
    %v422 = vunpack.c.l.b16 %v166
    %v423 = vunpack.c.l.b16 %v167
    %v424 = vunpack.c.l.b16 %v168
    %v425 = vpack.c.b16 %v394, %v393
    %v426 = vpack.c.b16 %v396, %v395
    %v427 = vpack.c.b16 %v398, %v397
    %v428 = vpack.c.b16 %v400, %v399
    %v429 = vpack.c.b16 %v402, %v401
    %v430 = vpack.c.b16 %v404, %v403
    %v431 = vpack.c.b16 %v406, %v405
    %v432 = vpack.c.b16 %v408, %v407
    %v433 = vpack.c.b16 %v410, %v409
    %v434 = vpack.c.b16 %v412, %v411
    %v435 = vpack.c.b16 %v414, %v413
    %v436 = vpack.c.b16 %v416, %v415
    %v437 = vpack.c.b16 %v418, %v417
    %v438 = vpack.c.b16 %v420, %v419
    %v439 = vpack.c.b16 %v422, %v421
    %v440 = vpack.c.b16 %v424, %v423
    %457 = vmatpush.bf16.msra.mxu0 %v432
    %458 = vmatpush.bf16.msra.mxu0 %v431
    %459 = vmatpush.bf16.msra.mxu0 %v430
    %460 = vmatpush.bf16.msra.mxu0 %v429
    %461 = vmatpush.bf16.msra.mxu0 %v428
    %462 = vmatpush.bf16.msra.mxu0 %v427
    %463 = vmatpush.bf16.msra.mxu0 %v426
    %464 = vmatpush.bf16.msra.mxu0 %v425
    %465 = vmatmul.bf16.gmra.mxu0 %v297
    %v466 = vpop.f32.mrf.mxu0
    %v467 = vadd.f32 0.0, %v466
    %v468 = vpop.f32.mrf.mxu0
    %v469 = vadd.f32 0.0, %v468
    %470 = vmatmul.bf16.gmra.mxu0 %v299
    %v471 = vpop.f32.mrf.mxu0
    %v472 = vadd.f32 0.0, %v471
    %v473 = vpop.f32.mrf.mxu0
    %v474 = vadd.f32 0.0, %v473
    %475 = vmatmul.bf16.gmra.mxu0 %v301
    %v476 = vpop.f32.mrf.mxu0
    %v477 = vadd.f32 0.0, %v476
    %v478 = vpop.f32.mrf.mxu0
    %v479 = vadd.f32 0.0, %v478
    %480 = vmatmul.bf16.gmra.mxu0 %v303
    %v481 = vpop.f32.mrf.mxu0
    %v482 = vadd.f32 0.0, %v481
    %v483 = vpop.f32.mrf.mxu0
    %v484 = vadd.f32 0.0, %v483
    %485 = vmatmul.bf16.gmra.mxu0 %v305
    %v486 = vpop.f32.mrf.mxu0
    %v487 = vadd.f32 0.0, %v486
    %v488 = vpop.f32.mrf.mxu0
    %v489 = vadd.f32 0.0, %v488
    %490 = vmatmul.bf16.gmra.mxu0 %v307
    %v491 = vpop.f32.mrf.mxu0
    %v492 = vadd.f32 0.0, %v491
    %v493 = vpop.f32.mrf.mxu0
    %v494 = vadd.f32 0.0, %v493
    %495 = vmatmul.bf16.gmra.mxu0 %v309
    %v496 = vpop.f32.mrf.mxu0
    %v497 = vadd.f32 0.0, %v496
    %v498 = vpop.f32.mrf.mxu0
    %v499 = vadd.f32 0.0, %v498
    %500 = vmatmul.bf16.gmra.mxu0 %v311
    %v501 = vpop.f32.mrf.mxu0
    %v502 = vadd.f32 0.0, %v501
    %v503 = vpop.f32.mrf.mxu0
    %v504 = vadd.f32 0.0, %v503
    %505 = vmatmul.bf16.gmra.mxu0 %v313
    %v506 = vpop.f32.mrf.mxu0
    %v507 = vadd.f32 0.0, %v506
    %v508 = vpop.f32.mrf.mxu0
    %v509 = vadd.f32 0.0, %v508
    %510 = vmatmul.bf16.gmra.mxu0 %v315
    %v511 = vpop.f32.mrf.mxu0
    %v512 = vadd.f32 0.0, %v511
    %v513 = vpop.f32.mrf.mxu0
    %v514 = vadd.f32 0.0, %v513
    %515 = vmatmul.bf16.gmra.mxu0 %v317
    %v516 = vpop.f32.mrf.mxu0
    %v517 = vadd.f32 0.0, %v516
    %v518 = vpop.f32.mrf.mxu0
    %v519 = vadd.f32 0.0, %v518
    %520 = vmatmul.bf16.gmra.mxu0 %v319
    %v521 = vpop.f32.mrf.mxu0
    %v522 = vadd.f32 0.0, %v521
    %v523 = vpop.f32.mrf.mxu0
    %v524 = vadd.f32 0.0, %v523
    %525 = vmatmul.bf16.gmra.mxu0 %v321
    %v526 = vpop.f32.mrf.mxu0
    %v527 = vadd.f32 0.0, %v526
    %v528 = vpop.f32.mrf.mxu0
    %v529 = vadd.f32 0.0, %v528
    %530 = vmatmul.bf16.gmra.mxu0 %v323
    %v531 = vpop.f32.mrf.mxu0
    %v532 = vadd.f32 0.0, %v531
    %v533 = vpop.f32.mrf.mxu0
    %v534 = vadd.f32 0.0, %v533
    %535 = vmatmul.bf16.gmra.mxu0 %v325
    %v536 = vpop.f32.mrf.mxu0
    %v537 = vadd.f32 0.0, %v536
    %v538 = vpop.f32.mrf.mxu0
    %v539 = vadd.f32 0.0, %v538
    %540 = vmatmul.bf16.gmra.mxu0 %v327
    %v541 = vpop.f32.mrf.mxu0
    %v542 = vadd.f32 0.0, %v541
    %v543 = vpop.f32.mrf.mxu0
    %v544 = vadd.f32 0.0, %v543
    %545 = vdwg.mxu0
    %546 = vmatpush.bf16.msra.mxu0 %v440
    %547 = vmatpush.bf16.msra.mxu0 %v439
    %548 = vmatpush.bf16.msra.mxu0 %v438
    %549 = vmatpush.bf16.msra.mxu0 %v437
    %550 = vmatpush.bf16.msra.mxu0 %v436
    %551 = vmatpush.bf16.msra.mxu0 %v435
    %552 = vmatpush.bf16.msra.mxu0 %v434
    %553 = vmatpush.bf16.msra.mxu0 %v433
    %554 = vmatmul.bf16.gmra.mxu0 %v298
    %v555 = vpop.f32.mrf.mxu0
    %v556 = vadd.f32 %v467, %v555
    %v557 = vpop.f32.mrf.mxu0
    %v558 = vadd.f32 %v469, %v557
    %559 = vmatmul.bf16.gmra.mxu0 %v300
    %v560 = vpop.f32.mrf.mxu0
    %v561 = vadd.f32 %v472, %v560
    %v562 = vpop.f32.mrf.mxu0
    %v563 = vadd.f32 %v474, %v562
    %564 = vmatmul.bf16.gmra.mxu0 %v302
    %v565 = vpop.f32.mrf.mxu0
    %v566 = vadd.f32 %v477, %v565
    %v567 = vpop.f32.mrf.mxu0
    %v568 = vadd.f32 %v479, %v567
    %569 = vmatmul.bf16.gmra.mxu0 %v304
    %v570 = vpop.f32.mrf.mxu0
    %v571 = vadd.f32 %v482, %v570
    %v572 = vpop.f32.mrf.mxu0
    %v573 = vadd.f32 %v484, %v572
    %574 = vmatmul.bf16.gmra.mxu0 %v306
    %v575 = vpop.f32.mrf.mxu0
    %v576 = vadd.f32 %v487, %v575
    %v577 = vpop.f32.mrf.mxu0
    %v578 = vadd.f32 %v489, %v577
    %579 = vmatmul.bf16.gmra.mxu0 %v308
    %v580 = vpop.f32.mrf.mxu0
    %v581 = vadd.f32 %v492, %v580
    %v582 = vpop.f32.mrf.mxu0
    %v583 = vadd.f32 %v494, %v582
    %584 = vmatmul.bf16.gmra.mxu0 %v310
    %v585 = vpop.f32.mrf.mxu0
    %v586 = vadd.f32 %v497, %v585
    %v587 = vpop.f32.mrf.mxu0
    %v588 = vadd.f32 %v499, %v587
    %589 = vmatmul.bf16.gmra.mxu0 %v312
    %v590 = vpop.f32.mrf.mxu0
    %v591 = vadd.f32 %v502, %v590
    %v592 = vpop.f32.mrf.mxu0
    %v593 = vadd.f32 %v504, %v592
    %594 = vmatmul.bf16.gmra.mxu0 %v314
    %v595 = vpop.f32.mrf.mxu0
    %v596 = vadd.f32 %v507, %v595
    %v597 = vpop.f32.mrf.mxu0
    %v598 = vadd.f32 %v509, %v597
    %599 = vmatmul.bf16.gmra.mxu0 %v316
    %v600 = vpop.f32.mrf.mxu0
    %v601 = vadd.f32 %v512, %v600
    %v602 = vpop.f32.mrf.mxu0
    %v603 = vadd.f32 %v514, %v602
    %604 = vmatmul.bf16.gmra.mxu0 %v318
    %v605 = vpop.f32.mrf.mxu0
    %v606 = vadd.f32 %v517, %v605
    %v607 = vpop.f32.mrf.mxu0
    %v608 = vadd.f32 %v519, %v607
    %609 = vmatmul.bf16.gmra.mxu0 %v320
    %v610 = vpop.f32.mrf.mxu0
    %v611 = vadd.f32 %v522, %v610
    %v612 = vpop.f32.mrf.mxu0
    %v613 = vadd.f32 %v524, %v612
    %614 = vmatmul.bf16.gmra.mxu0 %v322
    %v615 = vpop.f32.mrf.mxu0
    %v616 = vadd.f32 %v527, %v615
    %v617 = vpop.f32.mrf.mxu0
    %v618 = vadd.f32 %v529, %v617
    %619 = vmatmul.bf16.gmra.mxu0 %v324
    %v620 = vpop.f32.mrf.mxu0
    %v621 = vadd.f32 %v532, %v620
    %v622 = vpop.f32.mrf.mxu0
    %v623 = vadd.f32 %v534, %v622
    %624 = vmatmul.bf16.gmra.mxu0 %v326
    %v625 = vpop.f32.mrf.mxu0
    %v626 = vadd.f32 %v537, %v625
    %v627 = vpop.f32.mrf.mxu0
    %v628 = vadd.f32 %v539, %v627
    %629 = vmatmul.bf16.gmra.mxu0 %v328
    %v630 = vpop.f32.mrf.mxu0
    %v631 = vadd.f32 %v542, %v630
    %v632 = vpop.f32.mrf.mxu0
    %v633 = vadd.f32 %v544, %v632
    %634 = vdwg.mxu0
    %636 = vset.pattern.permute.xlu0 0
    %637 = vperm.xlu0 %636, %v169
    %v638 = vpop.permute.xlu0 %637
    %641 = vset.pattern.permute.xlu0 0
    %642 = vperm.xlu0 %641, %v170
    %v643 = vpop.permute.xlu0 %642
    %646 = vset.pattern.permute.xlu0 0
    %647 = vperm.xlu0 %646, %v171
    %v648 = vpop.permute.xlu0 %647
    %651 = vset.pattern.permute.xlu0 0
    %652 = vperm.xlu0 %651, %v172
    %v653 = vpop.permute.xlu0 %652
    %656 = vset.pattern.permute.xlu0 0
    %657 = vperm.xlu0 %656, %v173
    %v658 = vpop.permute.xlu0 %657
    %661 = vset.pattern.permute.xlu0 0
    %662 = vperm.xlu0 %661, %v174
    %v663 = vpop.permute.xlu0 %662
    %666 = vset.pattern.permute.xlu0 0
    %667 = vperm.xlu0 %666, %v175
    %v668 = vpop.permute.xlu0 %667
    %671 = vset.pattern.permute.xlu0 0
    %672 = vperm.xlu0 %671, %v176
    %v673 = vpop.permute.xlu0 %672
    %676 = vset.pattern.permute.xlu0 0
    %677 = vperm.xlu0 %676, %v177
    %v678 = vpop.permute.xlu0 %677
    %681 = vset.pattern.permute.xlu0 0
    %682 = vperm.xlu0 %681, %v178
    %v683 = vpop.permute.xlu0 %682
    %686 = vset.pattern.permute.xlu0 0
    %687 = vperm.xlu0 %686, %v179
    %v688 = vpop.permute.xlu0 %687
    %691 = vset.pattern.permute.xlu0 0
    %692 = vperm.xlu0 %691, %v180
    %v693 = vpop.permute.xlu0 %692
    %696 = vset.pattern.permute.xlu0 0
    %697 = vperm.xlu0 %696, %v181
    %v698 = vpop.permute.xlu0 %697
    %701 = vset.pattern.permute.xlu0 0
    %702 = vperm.xlu0 %701, %v182
    %v703 = vpop.permute.xlu0 %702
    %706 = vset.pattern.permute.xlu0 0
    %707 = vperm.xlu0 %706, %v183
    %v708 = vpop.permute.xlu0 %707
    %711 = vset.pattern.permute.xlu0 0
    %712 = vperm.xlu0 %711, %v184
    %v713 = vpop.permute.xlu0 %712
    %716 = vset.pattern.permute.xlu0 0
    %717 = vperm.xlu0 %716, %v185
    %v718 = vpop.permute.xlu0 %717
    %721 = vset.pattern.permute.xlu0 0
    %722 = vperm.xlu0 %721, %v186
    %v723 = vpop.permute.xlu0 %722
    %726 = vset.pattern.permute.xlu0 0
    %727 = vperm.xlu0 %726, %v187
    %v728 = vpop.permute.xlu0 %727
    %731 = vset.pattern.permute.xlu0 0
    %732 = vperm.xlu0 %731, %v188
    %v733 = vpop.permute.xlu0 %732
    %736 = vset.pattern.permute.xlu0 0
    %737 = vperm.xlu0 %736, %v189
    %v738 = vpop.permute.xlu0 %737
    %741 = vset.pattern.permute.xlu0 0
    %742 = vperm.xlu0 %741, %v190
    %v743 = vpop.permute.xlu0 %742
    %746 = vset.pattern.permute.xlu0 0
    %747 = vperm.xlu0 %746, %v191
    %v748 = vpop.permute.xlu0 %747
    %751 = vset.pattern.permute.xlu0 0
    %752 = vperm.xlu0 %751, %v192
    %v753 = vpop.permute.xlu0 %752
    %756 = vset.pattern.permute.xlu0 0
    %757 = vperm.xlu0 %756, %v193
    %v758 = vpop.permute.xlu0 %757
    %761 = vset.pattern.permute.xlu0 0
    %762 = vperm.xlu0 %761, %v194
    %v763 = vpop.permute.xlu0 %762
    %766 = vset.pattern.permute.xlu0 0
    %767 = vperm.xlu0 %766, %v195
    %v768 = vpop.permute.xlu0 %767
    %771 = vset.pattern.permute.xlu0 0
    %772 = vperm.xlu0 %771, %v196
    %v773 = vpop.permute.xlu0 %772
    %776 = vset.pattern.permute.xlu0 0
    %777 = vperm.xlu0 %776, %v197
    %v778 = vpop.permute.xlu0 %777
    %781 = vset.pattern.permute.xlu0 0
    %782 = vperm.xlu0 %781, %v198
    %v783 = vpop.permute.xlu0 %782
    %786 = vset.pattern.permute.xlu0 0
    %787 = vperm.xlu0 %786, %v199
    %v788 = vpop.permute.xlu0 %787
    %791 = vset.pattern.permute.xlu0 0
    %792 = vperm.xlu0 %791, %v200
    %v793 = vpop.permute.xlu0 %792
    %v795 = vmul.f32 %v556, %v638
    %v796 = vmul.f32 %v558, %v643
    %v797 = vmul.f32 %v561, %v648
    %v798 = vmul.f32 %v563, %v653
    %v799 = vmul.f32 %v566, %v658
    %v800 = vmul.f32 %v568, %v663
    %v801 = vmul.f32 %v571, %v668
    %v802 = vmul.f32 %v573, %v673
    %v803 = vmul.f32 %v576, %v678
    %v804 = vmul.f32 %v578, %v683
    %v805 = vmul.f32 %v581, %v688
    %v806 = vmul.f32 %v583, %v693
    %v807 = vmul.f32 %v586, %v698
    %v808 = vmul.f32 %v588, %v703
    %v809 = vmul.f32 %v591, %v708
    %v810 = vmul.f32 %v593, %v713
    %v811 = vmul.f32 %v596, %v718
    %v812 = vmul.f32 %v598, %v723
    %v813 = vmul.f32 %v601, %v728
    %v814 = vmul.f32 %v603, %v733
    %v815 = vmul.f32 %v606, %v738
    %v816 = vmul.f32 %v608, %v743
    %v817 = vmul.f32 %v611, %v748
    %v818 = vmul.f32 %v613, %v753
    %v819 = vmul.f32 %v616, %v758
    %v820 = vmul.f32 %v618, %v763
    %v821 = vmul.f32 %v621, %v768
    %v822 = vmul.f32 %v623, %v773
    %v823 = vmul.f32 %v626, %v778
    %v824 = vmul.f32 %v628, %v783
    %v825 = vmul.f32 %v631, %v788
    %v826 = vmul.f32 %v633, %v793
    %v827 = vunpack.c.l.bf16 %v137
    %v828 = vunpack.c.l.bf16 %v138
    %v829 = vunpack.c.l.bf16 %v139
    %v830 = vunpack.c.l.bf16 %v140
    %v831 = vunpack.c.l.bf16 %v141
    %v832 = vunpack.c.l.bf16 %v142
    %v833 = vunpack.c.l.bf16 %v143
    %v834 = vunpack.c.l.bf16 %v144
    %v835 = vunpack.c.l.bf16 %v145
    %v836 = vunpack.c.l.bf16 %v146
    %v837 = vunpack.c.l.bf16 %v147
    %v838 = vunpack.c.l.bf16 %v148
    %v839 = vunpack.c.l.bf16 %v149
    %v840 = vunpack.c.l.bf16 %v150
    %v841 = vunpack.c.l.bf16 %v151
    %v842 = vunpack.c.l.bf16 %v152
    %v843 = vunpack.c.l.bf16 %v153
    %v844 = vunpack.c.l.bf16 %v154
    %v845 = vunpack.c.l.bf16 %v155
    %v846 = vunpack.c.l.bf16 %v156
    %v847 = vunpack.c.l.bf16 %v157
    %v848 = vunpack.c.l.bf16 %v158
    %v849 = vunpack.c.l.bf16 %v159
    %v850 = vunpack.c.l.bf16 %v160
    %v851 = vunpack.c.l.bf16 %v161
    %v852 = vunpack.c.l.bf16 %v162
    %v853 = vunpack.c.l.bf16 %v163
    %v854 = vunpack.c.l.bf16 %v164
    %v855 = vunpack.c.l.bf16 %v165
    %v856 = vunpack.c.l.bf16 %v166
    %v857 = vunpack.c.l.bf16 %v167
    %v858 = vunpack.c.l.bf16 %v168
    %v859 = vld [vmem:[%s4] sm:$0xff]
    %v860 = vld [vmem:[%s4 + $0x8] sm:$0xff]
    %v861 = vld [vmem:[%s4 + $0x10] sm:$0xff]
    %v862 = vld [vmem:[%s4 + $0x18] sm:$0xff]
    %v863 = vld [vmem:[#allocation2] sm:$0xff]
    %v864 = vld [vmem:[#allocation2 + $0x8] sm:$0xff]
    %v865 = vld [vmem:[#allocation2 + $0x10] sm:$0xff]
    %v866 = vld [vmem:[#allocation2 + $0x18] sm:$0xff]
    %vm867 = vcmask 261120
    %v869 = vsel %vm867, %v795, 0
    %v872 = vsel %vm867, %v796, 0
    %v875 = vsel %vm867, %v797, 0
    %v878 = vsel %vm867, %v798, 0
    %v881 = vsel %vm867, %v799, 0
    %v884 = vsel %vm867, %v800, 0
    %v887 = vsel %vm867, %v801, 0
    %v890 = vsel %vm867, %v802, 0
    %v893 = vsel %vm867, %v803, 0
    %v896 = vsel %vm867, %v804, 0
    %v899 = vsel %vm867, %v805, 0
    %v902 = vsel %vm867, %v806, 0
    %v905 = vsel %vm867, %v807, 0
    %v908 = vsel %vm867, %v808, 0
    %v911 = vsel %vm867, %v809, 0
    %v914 = vsel %vm867, %v810, 0
    %v917 = vsel %vm867, %v811, 0
    %v920 = vsel %vm867, %v812, 0
    %v923 = vsel %vm867, %v813, 0
    %v926 = vsel %vm867, %v814, 0
    %v929 = vsel %vm867, %v815, 0
    %v932 = vsel %vm867, %v816, 0
    %v935 = vsel %vm867, %v817, 0
    %v938 = vsel %vm867, %v818, 0
    %v941 = vsel %vm867, %v819, 0
    %v944 = vsel %vm867, %v820, 0
    %v947 = vsel %vm867, %v821, 0
    %v950 = vsel %vm867, %v822, 0
    %v953 = vsel %vm867, %v823, 0
    %v956 = vsel %vm867, %v824, 0
    %v959 = vsel %vm867, %v825, 0
    %v962 = vsel %vm867, %v826, 0
    %964 = vmatpush.msra.mxu0 0.0
    %965 = vmatpush.msra.mxu0 0.0
    %966 = vmatpush.msra.mxu0 0.0
    %967 = vmatpush.msra.mxu0 0.0
    %968 = vmatpush.msra.mxu0 0.0
    %969 = vmatpush.msra.mxu0 0.0
    %970 = vmatpush.msra.mxu0 0.0
    %971 = vmatpush.msra.mxu0 0.0
    %972 = vmatpush.msra.mxu0 0.0
    %973 = vmatpush.msra.mxu0 0.0
    %974 = vmatpush.msra.mxu0 0.0
    %975 = vmatpush.msra.mxu0 0.0
    %976 = vmatpush.msra.mxu0 %v866
    %977 = vmatpush.msra.mxu0 %v865
    %978 = vmatpush.msra.mxu0 %v864
    %979 = vmatpush.msra.mxu0 %v863
    %980 = vmatmul.f32.gmra.mxu0 %v869
    %v981 = vpop.f32.mrf.mxu0
    %v982 = vadd.f32 0.0, %v981
    %983 = vmatmul.f32.gmra.mxu0 %v872
    %v984 = vpop.f32.mrf.mxu0
    %v985 = vadd.f32 0.0, %v984
    %986 = vmatmul.f32.gmra.mxu0 %v875
    %v987 = vpop.f32.mrf.mxu0
    %v988 = vadd.f32 0.0, %v987
    %989 = vmatmul.f32.gmra.mxu0 %v878
    %v990 = vpop.f32.mrf.mxu0
    %v991 = vadd.f32 0.0, %v990
    %992 = vmatmul.f32.gmra.mxu0 %v881
    %v993 = vpop.f32.mrf.mxu0
    %v994 = vadd.f32 0.0, %v993
    %995 = vmatmul.f32.gmra.mxu0 %v884
    %v996 = vpop.f32.mrf.mxu0
    %v997 = vadd.f32 0.0, %v996
    %998 = vmatmul.f32.gmra.mxu0 %v887
    %v999 = vpop.f32.mrf.mxu0
    %v1000 = vadd.f32 0.0, %v999
    %1001 = vmatmul.f32.gmra.mxu0 %v890
    %v1002 = vpop.f32.mrf.mxu0
    %v1003 = vadd.f32 0.0, %v1002
    %1004 = vmatmul.f32.gmra.mxu0 %v893
    %v1005 = vpop.f32.mrf.mxu0
    %v1006 = vadd.f32 0.0, %v1005
    %1007 = vmatmul.f32.gmra.mxu0 %v896
    %v1008 = vpop.f32.mrf.mxu0
    %v1009 = vadd.f32 0.0, %v1008
    %1010 = vmatmul.f32.gmra.mxu0 %v899
    %v1011 = vpop.f32.mrf.mxu0
    %v1012 = vadd.f32 0.0, %v1011
    %1013 = vmatmul.f32.gmra.mxu0 %v902
    %v1014 = vpop.f32.mrf.mxu0
    %v1015 = vadd.f32 0.0, %v1014
    %1016 = vmatmul.f32.gmra.mxu0 %v905
    %v1017 = vpop.f32.mrf.mxu0
    %v1018 = vadd.f32 0.0, %v1017
    %1019 = vmatmul.f32.gmra.mxu0 %v908
    %v1020 = vpop.f32.mrf.mxu0
    %v1021 = vadd.f32 0.0, %v1020
    %1022 = vmatmul.f32.gmra.mxu0 %v911
    %v1023 = vpop.f32.mrf.mxu0
    %v1024 = vadd.f32 0.0, %v1023
    %1025 = vmatmul.f32.gmra.mxu0 %v914
    %v1026 = vpop.f32.mrf.mxu0
    %v1027 = vadd.f32 0.0, %v1026
    %1028 = vmatmul.f32.gmra.mxu0 %v917
    %v1029 = vpop.f32.mrf.mxu0
    %v1030 = vadd.f32 0.0, %v1029
    %1031 = vmatmul.f32.gmra.mxu0 %v920
    %v1032 = vpop.f32.mrf.mxu0
    %v1033 = vadd.f32 0.0, %v1032
    %1034 = vmatmul.f32.gmra.mxu0 %v923
    %v1035 = vpop.f32.mrf.mxu0
    %v1036 = vadd.f32 0.0, %v1035
    %1037 = vmatmul.f32.gmra.mxu0 %v926
    %v1038 = vpop.f32.mrf.mxu0
    %v1039 = vadd.f32 0.0, %v1038
    %1040 = vmatmul.f32.gmra.mxu0 %v929
    %v1041 = vpop.f32.mrf.mxu0
    %v1042 = vadd.f32 0.0, %v1041
    %1043 = vmatmul.f32.gmra.mxu0 %v932
    %v1044 = vpop.f32.mrf.mxu0
    %v1045 = vadd.f32 0.0, %v1044
    %1046 = vmatmul.f32.gmra.mxu0 %v935
    %v1047 = vpop.f32.mrf.mxu0
    %v1048 = vadd.f32 0.0, %v1047
    %1049 = vmatmul.f32.gmra.mxu0 %v938
    %v1050 = vpop.f32.mrf.mxu0
    %v1051 = vadd.f32 0.0, %v1050
    %1052 = vmatmul.f32.gmra.mxu0 %v941
    %v1053 = vpop.f32.mrf.mxu0
    %v1054 = vadd.f32 0.0, %v1053
    %1055 = vmatmul.f32.gmra.mxu0 %v944
    %v1056 = vpop.f32.mrf.mxu0
    %v1057 = vadd.f32 0.0, %v1056
    %1058 = vmatmul.f32.gmra.mxu0 %v947
    %v1059 = vpop.f32.mrf.mxu0
    %v1060 = vadd.f32 0.0, %v1059
    %1061 = vmatmul.f32.gmra.mxu0 %v950
    %v1062 = vpop.f32.mrf.mxu0
    %v1063 = vadd.f32 0.0, %v1062
    %1064 = vmatmul.f32.gmra.mxu0 %v953
    %v1065 = vpop.f32.mrf.mxu0
    %v1066 = vadd.f32 0.0, %v1065
    %1067 = vmatmul.f32.gmra.mxu0 %v956
    %v1068 = vpop.f32.mrf.mxu0
    %v1069 = vadd.f32 0.0, %v1068
    %1070 = vmatmul.f32.gmra.mxu0 %v959
    %v1071 = vpop.f32.mrf.mxu0
    %v1072 = vadd.f32 0.0, %v1071
    %1073 = vmatmul.f32.gmra.mxu0 %v962
    %v1074 = vpop.f32.mrf.mxu0
    %v1075 = vadd.f32 0.0, %v1074
    %1076 = vdwg.mxu0
    %v1078 = vsel %vm867, %v827, 0
    %v1081 = vsel %vm867, %v828, 0
    %v1084 = vsel %vm867, %v829, 0
    %v1087 = vsel %vm867, %v830, 0
    %v1090 = vsel %vm867, %v831, 0
    %v1093 = vsel %vm867, %v832, 0
    %v1096 = vsel %vm867, %v833, 0
    %v1099 = vsel %vm867, %v834, 0
    %v1102 = vsel %vm867, %v835, 0
    %v1105 = vsel %vm867, %v836, 0
    %v1108 = vsel %vm867, %v837, 0
    %v1111 = vsel %vm867, %v838, 0
    %v1114 = vsel %vm867, %v839, 0
    %v1117 = vsel %vm867, %v840, 0
    %v1120 = vsel %vm867, %v841, 0
    %v1123 = vsel %vm867, %v842, 0
    %v1126 = vsel %vm867, %v843, 0
    %v1129 = vsel %vm867, %v844, 0
    %v1132 = vsel %vm867, %v845, 0
    %v1135 = vsel %vm867, %v846, 0
    %v1138 = vsel %vm867, %v847, 0
    %v1141 = vsel %vm867, %v848, 0
    %v1144 = vsel %vm867, %v849, 0
    %v1147 = vsel %vm867, %v850, 0
    %v1150 = vsel %vm867, %v851, 0
    %v1153 = vsel %vm867, %v852, 0
    %v1156 = vsel %vm867, %v853, 0
    %v1159 = vsel %vm867, %v854, 0
    %v1162 = vsel %vm867, %v855, 0
    %v1165 = vsel %vm867, %v856, 0
    %v1168 = vsel %vm867, %v857, 0
    %v1171 = vsel %vm867, %v858, 0
    %1173 = vmatpush.msra.mxu0 0.0
    %1174 = vmatpush.msra.mxu0 0.0
    %1175 = vmatpush.msra.mxu0 0.0
    %1176 = vmatpush.msra.mxu0 0.0
    %1177 = vmatpush.msra.mxu0 0.0
    %1178 = vmatpush.msra.mxu0 0.0
    %1179 = vmatpush.msra.mxu0 0.0
    %1180 = vmatpush.msra.mxu0 0.0
    %1181 = vmatpush.msra.mxu0 0.0
    %1182 = vmatpush.msra.mxu0 0.0
    %1183 = vmatpush.msra.mxu0 0.0
    %1184 = vmatpush.msra.mxu0 0.0
    %1185 = vmatpush.msra.mxu0 %v862
    %1186 = vmatpush.msra.mxu0 %v861
    %1187 = vmatpush.msra.mxu0 %v860
    %1188 = vmatpush.msra.mxu0 %v859
    %1189 = vmatmul.f32.gmra.mxu0 %v1078
    %v1190 = vpop.f32.mrf.mxu0
    %v1191 = vadd.f32 %v982, %v1190
    %1192 = vmatmul.f32.gmra.mxu0 %v1081
    %v1193 = vpop.f32.mrf.mxu0
    %v1194 = vadd.f32 %v985, %v1193
    %1195 = vmatmul.f32.gmra.mxu0 %v1084
    %v1196 = vpop.f32.mrf.mxu0
    %v1197 = vadd.f32 %v988, %v1196
    %1198 = vmatmul.f32.gmra.mxu0 %v1087
    %v1199 = vpop.f32.mrf.mxu0
    %v1200 = vadd.f32 %v991, %v1199
    %1201 = vmatmul.f32.gmra.mxu0 %v1090
    %v1202 = vpop.f32.mrf.mxu0
    %v1203 = vadd.f32 %v994, %v1202
    %1204 = vmatmul.f32.gmra.mxu0 %v1093
    %v1205 = vpop.f32.mrf.mxu0
    %v1206 = vadd.f32 %v997, %v1205
    %1207 = vmatmul.f32.gmra.mxu0 %v1096
    %v1208 = vpop.f32.mrf.mxu0
    %v1209 = vadd.f32 %v1000, %v1208
    %1210 = vmatmul.f32.gmra.mxu0 %v1099
    %v1211 = vpop.f32.mrf.mxu0
    %v1212 = vadd.f32 %v1003, %v1211
    %1213 = vmatmul.f32.gmra.mxu0 %v1102
    %v1214 = vpop.f32.mrf.mxu0
    %v1215 = vadd.f32 %v1006, %v1214
    %1216 = vmatmul.f32.gmra.mxu0 %v1105
    %v1217 = vpop.f32.mrf.mxu0
    %v1218 = vadd.f32 %v1009, %v1217
    %1219 = vmatmul.f32.gmra.mxu0 %v1108
    %v1220 = vpop.f32.mrf.mxu0
    %v1221 = vadd.f32 %v1012, %v1220
    %1222 = vmatmul.f32.gmra.mxu0 %v1111
    %v1223 = vpop.f32.mrf.mxu0
    %v1224 = vadd.f32 %v1015, %v1223
    %1225 = vmatmul.f32.gmra.mxu0 %v1114
    %v1226 = vpop.f32.mrf.mxu0
    %v1227 = vadd.f32 %v1018, %v1226
    %1228 = vmatmul.f32.gmra.mxu0 %v1117
    %v1229 = vpop.f32.mrf.mxu0
    %v1230 = vadd.f32 %v1021, %v1229
    %1231 = vmatmul.f32.gmra.mxu0 %v1120
    %v1232 = vpop.f32.mrf.mxu0
    %v1233 = vadd.f32 %v1024, %v1232
    %1234 = vmatmul.f32.gmra.mxu0 %v1123
    %v1235 = vpop.f32.mrf.mxu0
    %v1236 = vadd.f32 %v1027, %v1235
    %1237 = vmatmul.f32.gmra.mxu0 %v1126
    %v1238 = vpop.f32.mrf.mxu0
    %v1239 = vadd.f32 %v1030, %v1238
    %1240 = vmatmul.f32.gmra.mxu0 %v1129
    %v1241 = vpop.f32.mrf.mxu0
    %v1242 = vadd.f32 %v1033, %v1241
    %1243 = vmatmul.f32.gmra.mxu0 %v1132
    %v1244 = vpop.f32.mrf.mxu0
    %v1245 = vadd.f32 %v1036, %v1244
    %1246 = vmatmul.f32.gmra.mxu0 %v1135
    %v1247 = vpop.f32.mrf.mxu0
    %v1248 = vadd.f32 %v1039, %v1247
    %1249 = vmatmul.f32.gmra.mxu0 %v1138
    %v1250 = vpop.f32.mrf.mxu0
    %v1251 = vadd.f32 %v1042, %v1250
    %1252 = vmatmul.f32.gmra.mxu0 %v1141
    %v1253 = vpop.f32.mrf.mxu0
    %v1254 = vadd.f32 %v1045, %v1253
    %1255 = vmatmul.f32.gmra.mxu0 %v1144
    %v1256 = vpop.f32.mrf.mxu0
    %v1257 = vadd.f32 %v1048, %v1256
    %1258 = vmatmul.f32.gmra.mxu0 %v1147
    %v1259 = vpop.f32.mrf.mxu0
    %v1260 = vadd.f32 %v1051, %v1259
    %1261 = vmatmul.f32.gmra.mxu0 %v1150
    %v1262 = vpop.f32.mrf.mxu0
    %v1263 = vadd.f32 %v1054, %v1262
    %1264 = vmatmul.f32.gmra.mxu0 %v1153
    %v1265 = vpop.f32.mrf.mxu0
    %v1266 = vadd.f32 %v1057, %v1265
    %1267 = vmatmul.f32.gmra.mxu0 %v1156
    %v1268 = vpop.f32.mrf.mxu0
    %v1269 = vadd.f32 %v1060, %v1268
    %1270 = vmatmul.f32.gmra.mxu0 %v1159
    %v1271 = vpop.f32.mrf.mxu0
    %v1272 = vadd.f32 %v1063, %v1271
    %1273 = vmatmul.f32.gmra.mxu0 %v1162
    %v1274 = vpop.f32.mrf.mxu0
    %v1275 = vadd.f32 %v1066, %v1274
    %1276 = vmatmul.f32.gmra.mxu0 %v1165
    %v1277 = vpop.f32.mrf.mxu0
    %v1278 = vadd.f32 %v1069, %v1277
    %1279 = vmatmul.f32.gmra.mxu0 %v1168
    %v1280 = vpop.f32.mrf.mxu0
    %v1281 = vadd.f32 %v1072, %v1280
    %1282 = vmatmul.f32.gmra.mxu0 %v1171
    %v1283 = vpop.f32.mrf.mxu0
    %v1284 = vadd.f32 %v1075, %v1283
    %1285 = vdwg.mxu0
    %v1286 = vld [vmem:[%s6] sm:$0x1]
    %v1288 = vperm.slane %v1286, 0
    %v1290 = vadd.f32 %v1191, %v1288
    %v1291 = vadd.f32 %v1194, %v1288
    %v1292 = vadd.f32 %v1197, %v1288
    %v1293 = vadd.f32 %v1200, %v1288
    %v1294 = vadd.f32 %v1203, %v1288
    %v1295 = vadd.f32 %v1206, %v1288
    %v1296 = vadd.f32 %v1209, %v1288
    %v1297 = vadd.f32 %v1212, %v1288
    %v1298 = vadd.f32 %v1215, %v1288
    %v1299 = vadd.f32 %v1218, %v1288
    %v1300 = vadd.f32 %v1221, %v1288
    %v1301 = vadd.f32 %v1224, %v1288
    %v1302 = vadd.f32 %v1227, %v1288
    %v1303 = vadd.f32 %v1230, %v1288
    %v1304 = vadd.f32 %v1233, %v1288
    %v1305 = vadd.f32 %v1236, %v1288
    %v1306 = vadd.f32 %v1239, %v1288
    %v1307 = vadd.f32 %v1242, %v1288
    %v1308 = vadd.f32 %v1245, %v1288
    %v1309 = vadd.f32 %v1248, %v1288
    %v1310 = vadd.f32 %v1251, %v1288
    %v1311 = vadd.f32 %v1254, %v1288
    %v1312 = vadd.f32 %v1257, %v1288
    %v1313 = vadd.f32 %v1260, %v1288
    %v1314 = vadd.f32 %v1263, %v1288
    %v1315 = vadd.f32 %v1266, %v1288
    %v1316 = vadd.f32 %v1269, %v1288
    %v1317 = vadd.f32 %v1272, %v1288
    %v1318 = vadd.f32 %v1275, %v1288
    %v1319 = vadd.f32 %v1278, %v1288
    %v1320 = vadd.f32 %v1281, %v1288
    %v1321 = vadd.f32 %v1284, %v1288
    %v1322 = vmax.f32 %v1290, 0.0
    %v1323 = vmax.f32 %v1291, 0.0
    %v1324 = vmax.f32 %v1292, 0.0
    %v1325 = vmax.f32 %v1293, 0.0
    %v1326 = vmax.f32 %v1294, 0.0
    %v1327 = vmax.f32 %v1295, 0.0
    %v1328 = vmax.f32 %v1296, 0.0
    %v1329 = vmax.f32 %v1297, 0.0
    %v1330 = vmax.f32 %v1298, 0.0
    %v1331 = vmax.f32 %v1299, 0.0
    %v1332 = vmax.f32 %v1300, 0.0
    %v1333 = vmax.f32 %v1301, 0.0
    %v1334 = vmax.f32 %v1302, 0.0
    %v1335 = vmax.f32 %v1303, 0.0
    %v1336 = vmax.f32 %v1304, 0.0
    %v1337 = vmax.f32 %v1305, 0.0
    %v1338 = vmax.f32 %v1306, 0.0
    %v1339 = vmax.f32 %v1307, 0.0
    %v1340 = vmax.f32 %v1308, 0.0
    %v1341 = vmax.f32 %v1309, 0.0
    %v1342 = vmax.f32 %v1310, 0.0
    %v1343 = vmax.f32 %v1311, 0.0
    %v1344 = vmax.f32 %v1312, 0.0
    %v1345 = vmax.f32 %v1313, 0.0
    %v1346 = vmax.f32 %v1314, 0.0
    %v1347 = vmax.f32 %v1315, 0.0
    %v1348 = vmax.f32 %v1316, 0.0
    %v1349 = vmax.f32 %v1317, 0.0
    %v1350 = vmax.f32 %v1318, 0.0
    %v1351 = vmax.f32 %v1319, 0.0
    %v1352 = vmax.f32 %v1320, 0.0
    %v1353 = vmax.f32 %v1321, 0.0
    %v1354 = vld [vmem:[%s3] sm:$0xf]
    %v1355 = vld [vmem:[%s3 + $0x4] sm:$0xf]
    %v1356 = vld [vmem:[%s3 + $0x8] sm:$0xf]
    %v1357 = vld [vmem:[%s3 + $0xc] sm:$0xf]
    %v1358 = vld [vmem:[%s3 + $0x10] sm:$0xf]
    %v1359 = vld [vmem:[%s3 + $0x14] sm:$0xf]
    %v1360 = vld [vmem:[%s3 + $0x18] sm:$0xf]
    %v1361 = vld [vmem:[%s3 + $0x1c] sm:$0xf]
    %v1362 = vld [vmem:[%s3 + $0x20] sm:$0xf]
    %v1363 = vld [vmem:[%s3 + $0x24] sm:$0xf]
    %v1364 = vld [vmem:[%s3 + $0x28] sm:$0xf]
    %v1365 = vld [vmem:[%s3 + $0x2c] sm:$0xf]
    %v1366 = vld [vmem:[%s3 + $0x30] sm:$0xf]
    %v1367 = vld [vmem:[%s3 + $0x34] sm:$0xf]
    %v1368 = vld [vmem:[%s3 + $0x38] sm:$0xf]
    %v1369 = vld [vmem:[%s3 + $0x3c] sm:$0xf]
    %v1370 = vld [vmem:[%s3 + $0x40] sm:$0xf]
    %v1371 = vld [vmem:[%s3 + $0x44] sm:$0xf]
    %v1372 = vld [vmem:[%s3 + $0x48] sm:$0xf]
    %v1373 = vld [vmem:[%s3 + $0x4c] sm:$0xf]
    %v1374 = vld [vmem:[%s3 + $0x50] sm:$0xf]
    %v1375 = vld [vmem:[%s3 + $0x54] sm:$0xf]
    %v1376 = vld [vmem:[%s3 + $0x58] sm:$0xf]
    %v1377 = vld [vmem:[%s3 + $0x5c] sm:$0xf]
    %v1378 = vld [vmem:[%s3 + $0x60] sm:$0xf]
    %v1379 = vld [vmem:[%s3 + $0x64] sm:$0xf]
    %v1380 = vld [vmem:[%s3 + $0x68] sm:$0xf]
    %v1381 = vld [vmem:[%s3 + $0x6c] sm:$0xf]
    %v1382 = vld [vmem:[%s3 + $0x70] sm:$0xf]
    %v1383 = vld [vmem:[%s3 + $0x74] sm:$0xf]
    %v1384 = vld [vmem:[%s3 + $0x78] sm:$0xf]
    %v1385 = vld [vmem:[%s3 + $0x7c] sm:$0xf]
    %v1386 = vunpack.c.l.bf16 %v1354
    %v1387 = vunpack.c.l.bf16 %v1355
    %v1388 = vunpack.c.l.bf16 %v1356
    %v1389 = vunpack.c.l.bf16 %v1357
    %v1390 = vunpack.c.l.bf16 %v1358
    %v1391 = vunpack.c.l.bf16 %v1359
    %v1392 = vunpack.c.l.bf16 %v1360
    %v1393 = vunpack.c.l.bf16 %v1361
    %v1394 = vunpack.c.l.bf16 %v1362
    %v1395 = vunpack.c.l.bf16 %v1363
    %v1396 = vunpack.c.l.bf16 %v1364
    %v1397 = vunpack.c.l.bf16 %v1365
    %v1398 = vunpack.c.l.bf16 %v1366
    %v1399 = vunpack.c.l.bf16 %v1367
    %v1400 = vunpack.c.l.bf16 %v1368
    %v1401 = vunpack.c.l.bf16 %v1369
    %v1402 = vunpack.c.l.bf16 %v1370
    %v1403 = vunpack.c.l.bf16 %v1371
    %v1404 = vunpack.c.l.bf16 %v1372
    %v1405 = vunpack.c.l.bf16 %v1373
    %v1406 = vunpack.c.l.bf16 %v1374
    %v1407 = vunpack.c.l.bf16 %v1375
    %v1408 = vunpack.c.l.bf16 %v1376
    %v1409 = vunpack.c.l.bf16 %v1377
    %v1410 = vunpack.c.l.bf16 %v1378
    %v1411 = vunpack.c.l.bf16 %v1379
    %v1412 = vunpack.c.l.bf16 %v1380
    %v1413 = vunpack.c.l.bf16 %v1381
    %v1414 = vunpack.c.l.bf16 %v1382
    %v1415 = vunpack.c.l.bf16 %v1383
    %v1416 = vunpack.c.l.bf16 %v1384
    %v1417 = vunpack.c.l.bf16 %v1385
    %v1418 = vmul.f32 %v1322, %v1386
    %v1419 = vmul.f32 %v1323, %v1387
    %v1420 = vmul.f32 %v1324, %v1388
    %v1421 = vmul.f32 %v1325, %v1389
    %v1422 = vmul.f32 %v1326, %v1390
    %v1423 = vmul.f32 %v1327, %v1391
    %v1424 = vmul.f32 %v1328, %v1392
    %v1425 = vmul.f32 %v1329, %v1393
    %v1426 = vmul.f32 %v1330, %v1394
    %v1427 = vmul.f32 %v1331, %v1395
    %v1428 = vmul.f32 %v1332, %v1396
    %v1429 = vmul.f32 %v1333, %v1397
    %v1430 = vmul.f32 %v1334, %v1398
    %v1431 = vmul.f32 %v1335, %v1399
    %v1432 = vmul.f32 %v1336, %v1400
    %v1433 = vmul.f32 %v1337, %v1401
    %v1434 = vmul.f32 %v1338, %v1402
    %v1435 = vmul.f32 %v1339, %v1403
    %v1436 = vmul.f32 %v1340, %v1404
    %v1437 = vmul.f32 %v1341, %v1405
    %v1438 = vmul.f32 %v1342, %v1406
    %v1439 = vmul.f32 %v1343, %v1407
    %v1440 = vmul.f32 %v1344, %v1408
    %v1441 = vmul.f32 %v1345, %v1409
    %v1442 = vmul.f32 %v1346, %v1410
    %v1443 = vmul.f32 %v1347, %v1411
    %v1444 = vmul.f32 %v1348, %v1412
    %v1445 = vmul.f32 %v1349, %v1413
    %v1446 = vmul.f32 %v1350, %v1414
    %v1447 = vmul.f32 %v1351, %v1415
    %v1448 = vmul.f32 %v1352, %v1416
    %v1449 = vmul.f32 %v1353, %v1417
    %v1450 = vpack.c.bf16 %v1419, %v1418
    %v1451 = vpack.c.bf16 %v1421, %v1420
    %v1452 = vpack.c.bf16 %v1423, %v1422
    %v1453 = vpack.c.bf16 %v1425, %v1424
    %v1454 = vpack.c.bf16 %v1427, %v1426
    %v1455 = vpack.c.bf16 %v1429, %v1428
    %v1456 = vpack.c.bf16 %v1431, %v1430
    %v1457 = vpack.c.bf16 %v1433, %v1432
    %v1458 = vpack.c.bf16 %v1435, %v1434
    %v1459 = vpack.c.bf16 %v1437, %v1436
    %v1460 = vpack.c.bf16 %v1439, %v1438
    %v1461 = vpack.c.bf16 %v1441, %v1440
    %v1462 = vpack.c.bf16 %v1443, %v1442
    %v1463 = vpack.c.bf16 %v1445, %v1444
    %v1464 = vpack.c.bf16 %v1447, %v1446
    %v1465 = vpack.c.bf16 %v1449, %v1448
    %1466 = vmatpush.bf16.msra.mxu0 %v1457
    %1467 = vmatpush.bf16.msra.mxu0 %v1456
    %1468 = vmatpush.bf16.msra.mxu0 %v1455
    %1469 = vmatpush.bf16.msra.mxu0 %v1454
    %1470 = vmatpush.bf16.msra.mxu0 %v1453
    %1471 = vmatpush.bf16.msra.mxu0 %v1452
    %1472 = vmatpush.bf16.msra.mxu0 %v1451
    %1473 = vmatpush.bf16.msra.mxu0 %v1450
    %1474 = vmatmul.bf16.gmra.mxu0 %v297
    %v1475 = vpop.f32.mrf.mxu0
    %v1476 = vadd.f32 0.0, %v1475
    %v1477 = vpop.f32.mrf.mxu0
    %v1478 = vadd.f32 0.0, %v1477
    %1479 = vmatmul.bf16.gmra.mxu0 %v299
    %v1480 = vpop.f32.mrf.mxu0
    %v1481 = vadd.f32 0.0, %v1480
    %v1482 = vpop.f32.mrf.mxu0
    %v1483 = vadd.f32 0.0, %v1482
    %1484 = vmatmul.bf16.gmra.mxu0 %v301
    %v1485 = vpop.f32.mrf.mxu0
    %v1486 = vadd.f32 0.0, %v1485
    %v1487 = vpop.f32.mrf.mxu0
    %v1488 = vadd.f32 0.0, %v1487
    %1489 = vmatmul.bf16.gmra.mxu0 %v303
    %v1490 = vpop.f32.mrf.mxu0
    %v1491 = vadd.f32 0.0, %v1490
    %v1492 = vpop.f32.mrf.mxu0
    %v1493 = vadd.f32 0.0, %v1492
    %1494 = vmatmul.bf16.gmra.mxu0 %v305
    %v1495 = vpop.f32.mrf.mxu0
    %v1496 = vadd.f32 0.0, %v1495
    %v1497 = vpop.f32.mrf.mxu0
    %v1498 = vadd.f32 0.0, %v1497
    %1499 = vmatmul.bf16.gmra.mxu0 %v307
    %v1500 = vpop.f32.mrf.mxu0
    %v1501 = vadd.f32 0.0, %v1500
    %v1502 = vpop.f32.mrf.mxu0
    %v1503 = vadd.f32 0.0, %v1502
    %1504 = vmatmul.bf16.gmra.mxu0 %v309
    %v1505 = vpop.f32.mrf.mxu0
    %v1506 = vadd.f32 0.0, %v1505
    %v1507 = vpop.f32.mrf.mxu0
    %v1508 = vadd.f32 0.0, %v1507
    %1509 = vmatmul.bf16.gmra.mxu0 %v311
    %v1510 = vpop.f32.mrf.mxu0
    %v1511 = vadd.f32 0.0, %v1510
    %v1512 = vpop.f32.mrf.mxu0
    %v1513 = vadd.f32 0.0, %v1512
    %1514 = vmatmul.bf16.gmra.mxu0 %v313
    %v1515 = vpop.f32.mrf.mxu0
    %v1516 = vadd.f32 0.0, %v1515
    %v1517 = vpop.f32.mrf.mxu0
    %v1518 = vadd.f32 0.0, %v1517
    %1519 = vmatmul.bf16.gmra.mxu0 %v315
    %v1520 = vpop.f32.mrf.mxu0
    %v1521 = vadd.f32 0.0, %v1520
    %v1522 = vpop.f32.mrf.mxu0
    %v1523 = vadd.f32 0.0, %v1522
    %1524 = vmatmul.bf16.gmra.mxu0 %v317
    %v1525 = vpop.f32.mrf.mxu0
    %v1526 = vadd.f32 0.0, %v1525
    %v1527 = vpop.f32.mrf.mxu0
    %v1528 = vadd.f32 0.0, %v1527
    %1529 = vmatmul.bf16.gmra.mxu0 %v319
    %v1530 = vpop.f32.mrf.mxu0
    %v1531 = vadd.f32 0.0, %v1530
    %v1532 = vpop.f32.mrf.mxu0
    %v1533 = vadd.f32 0.0, %v1532
    %1534 = vmatmul.bf16.gmra.mxu0 %v321
    %v1535 = vpop.f32.mrf.mxu0
    %v1536 = vadd.f32 0.0, %v1535
    %v1537 = vpop.f32.mrf.mxu0
    %v1538 = vadd.f32 0.0, %v1537
    %1539 = vmatmul.bf16.gmra.mxu0 %v323
    %v1540 = vpop.f32.mrf.mxu0
    %v1541 = vadd.f32 0.0, %v1540
    %v1542 = vpop.f32.mrf.mxu0
    %v1543 = vadd.f32 0.0, %v1542
    %1544 = vmatmul.bf16.gmra.mxu0 %v325
    %v1545 = vpop.f32.mrf.mxu0
    %v1546 = vadd.f32 0.0, %v1545
    %v1547 = vpop.f32.mrf.mxu0
    %v1548 = vadd.f32 0.0, %v1547
    %1549 = vmatmul.bf16.gmra.mxu0 %v327
    %v1550 = vpop.f32.mrf.mxu0
    %v1551 = vadd.f32 0.0, %v1550
    %v1552 = vpop.f32.mrf.mxu0
    %v1553 = vadd.f32 0.0, %v1552
    %1554 = vdwg.mxu0
    %1555 = vmatpush.bf16.msra.mxu0 %v1465
    %1556 = vmatpush.bf16.msra.mxu0 %v1464
    %1557 = vmatpush.bf16.msra.mxu0 %v1463
    %1558 = vmatpush.bf16.msra.mxu0 %v1462
    %1559 = vmatpush.bf16.msra.mxu0 %v1461
    %1560 = vmatpush.bf16.msra.mxu0 %v1460
    %1561 = vmatpush.bf16.msra.mxu0 %v1459
    %1562 = vmatpush.bf16.msra.mxu0 %v1458
    %1563 = vmatmul.bf16.gmra.mxu0 %v298
    %v1564 = vpop.f32.mrf.mxu0
    %v1565 = vadd.f32 %v1476, %v1564
    %v1566 = vpop.f32.mrf.mxu0
    %v1567 = vadd.f32 %v1478, %v1566
    %1568 = vmatmul.bf16.gmra.mxu0 %v300
    %v1569 = vpop.f32.mrf.mxu0
    %v1570 = vadd.f32 %v1481, %v1569
    %v1571 = vpop.f32.mrf.mxu0
    %v1572 = vadd.f32 %v1483, %v1571
    %1573 = vmatmul.bf16.gmra.mxu0 %v302
    %v1574 = vpop.f32.mrf.mxu0
    %v1575 = vadd.f32 %v1486, %v1574
    %v1576 = vpop.f32.mrf.mxu0
    %v1577 = vadd.f32 %v1488, %v1576
    %1578 = vmatmul.bf16.gmra.mxu0 %v304
    %v1579 = vpop.f32.mrf.mxu0
    %v1580 = vadd.f32 %v1491, %v1579
    %v1581 = vpop.f32.mrf.mxu0
    %v1582 = vadd.f32 %v1493, %v1581
    %1583 = vmatmul.bf16.gmra.mxu0 %v306
    %v1584 = vpop.f32.mrf.mxu0
    %v1585 = vadd.f32 %v1496, %v1584
    %v1586 = vpop.f32.mrf.mxu0
    %v1587 = vadd.f32 %v1498, %v1586
    %1588 = vmatmul.bf16.gmra.mxu0 %v308
    %v1589 = vpop.f32.mrf.mxu0
    %v1590 = vadd.f32 %v1501, %v1589
    %v1591 = vpop.f32.mrf.mxu0
    %v1592 = vadd.f32 %v1503, %v1591
    %1593 = vmatmul.bf16.gmra.mxu0 %v310
    %v1594 = vpop.f32.mrf.mxu0
    %v1595 = vadd.f32 %v1506, %v1594
    %v1596 = vpop.f32.mrf.mxu0
    %v1597 = vadd.f32 %v1508, %v1596
    %1598 = vmatmul.bf16.gmra.mxu0 %v312
    %v1599 = vpop.f32.mrf.mxu0
    %v1600 = vadd.f32 %v1511, %v1599
    %v1601 = vpop.f32.mrf.mxu0
    %v1602 = vadd.f32 %v1513, %v1601
    %1603 = vmatmul.bf16.gmra.mxu0 %v314
    %v1604 = vpop.f32.mrf.mxu0
    %v1605 = vadd.f32 %v1516, %v1604
    %v1606 = vpop.f32.mrf.mxu0
    %v1607 = vadd.f32 %v1518, %v1606
    %1608 = vmatmul.bf16.gmra.mxu0 %v316
    %v1609 = vpop.f32.mrf.mxu0
    %v1610 = vadd.f32 %v1521, %v1609
    %v1611 = vpop.f32.mrf.mxu0
    %v1612 = vadd.f32 %v1523, %v1611
    %1613 = vmatmul.bf16.gmra.mxu0 %v318
    %v1614 = vpop.f32.mrf.mxu0
    %v1615 = vadd.f32 %v1526, %v1614
    %v1616 = vpop.f32.mrf.mxu0
    %v1617 = vadd.f32 %v1528, %v1616
    %1618 = vmatmul.bf16.gmra.mxu0 %v320
    %v1619 = vpop.f32.mrf.mxu0
    %v1620 = vadd.f32 %v1531, %v1619
    %v1621 = vpop.f32.mrf.mxu0
    %v1622 = vadd.f32 %v1533, %v1621
    %1623 = vmatmul.bf16.gmra.mxu0 %v322
    %v1624 = vpop.f32.mrf.mxu0
    %v1625 = vadd.f32 %v1536, %v1624
    %v1626 = vpop.f32.mrf.mxu0
    %v1627 = vadd.f32 %v1538, %v1626
    %1628 = vmatmul.bf16.gmra.mxu0 %v324
    %v1629 = vpop.f32.mrf.mxu0
    %v1630 = vadd.f32 %v1541, %v1629
    %v1631 = vpop.f32.mrf.mxu0
    %v1632 = vadd.f32 %v1543, %v1631
    %1633 = vmatmul.bf16.gmra.mxu0 %v326
    %v1634 = vpop.f32.mrf.mxu0
    %v1635 = vadd.f32 %v1546, %v1634
    %v1636 = vpop.f32.mrf.mxu0
    %v1637 = vadd.f32 %v1548, %v1636
    %1638 = vmatmul.bf16.gmra.mxu0 %v328
    %v1639 = vpop.f32.mrf.mxu0
    %v1640 = vadd.f32 %v1551, %v1639
    %v1641 = vpop.f32.mrf.mxu0
    %v1642 = vadd.f32 %v1553, %v1641
    %1643 = vdwg.mxu0
    %v1644 = vmul.f32 %v1565, %v638
    %v1645 = vmul.f32 %v1567, %v643
    %v1646 = vmul.f32 %v1570, %v648
    %v1647 = vmul.f32 %v1572, %v653
    %v1648 = vmul.f32 %v1575, %v658
    %v1649 = vmul.f32 %v1577, %v663
    %v1650 = vmul.f32 %v1580, %v668
    %v1651 = vmul.f32 %v1582, %v673
    %v1652 = vmul.f32 %v1585, %v678
    %v1653 = vmul.f32 %v1587, %v683
    %v1654 = vmul.f32 %v1590, %v688
    %v1655 = vmul.f32 %v1592, %v693
    %v1656 = vmul.f32 %v1595, %v698
    %v1657 = vmul.f32 %v1597, %v703
    %v1658 = vmul.f32 %v1600, %v708
    %v1659 = vmul.f32 %v1602, %v713
    %v1660 = vmul.f32 %v1605, %v718
    %v1661 = vmul.f32 %v1607, %v723
    %v1662 = vmul.f32 %v1610, %v728
    %v1663 = vmul.f32 %v1612, %v733
    %v1664 = vmul.f32 %v1615, %v738
    %v1665 = vmul.f32 %v1617, %v743
    %v1666 = vmul.f32 %v1620, %v748
    %v1667 = vmul.f32 %v1622, %v753
    %v1668 = vmul.f32 %v1625, %v758
    %v1669 = vmul.f32 %v1627, %v763
    %v1670 = vmul.f32 %v1630, %v768
    %v1671 = vmul.f32 %v1632, %v773
    %v1672 = vmul.f32 %v1635, %v778
    %v1673 = vmul.f32 %v1637, %v783
    %v1674 = vmul.f32 %v1640, %v788
    %v1675 = vmul.f32 %v1642, %v793
    %v1676 = vunpack.c.l.bf16 %v1450
    %v1677 = vunpack.c.h.bf16 %v1450
    %v1678 = vunpack.c.l.bf16 %v1451
    %v1679 = vunpack.c.h.bf16 %v1451
    %v1680 = vunpack.c.l.bf16 %v1452
    %v1681 = vunpack.c.h.bf16 %v1452
    %v1682 = vunpack.c.l.bf16 %v1453
    %v1683 = vunpack.c.h.bf16 %v1453
    %v1684 = vunpack.c.l.bf16 %v1454
    %v1685 = vunpack.c.h.bf16 %v1454
    %v1686 = vunpack.c.l.bf16 %v1455
    %v1687 = vunpack.c.h.bf16 %v1455
    %v1688 = vunpack.c.l.bf16 %v1456
    %v1689 = vunpack.c.h.bf16 %v1456
    %v1690 = vunpack.c.l.bf16 %v1457
    %v1691 = vunpack.c.h.bf16 %v1457
    %v1692 = vunpack.c.l.bf16 %v1458
    %v1693 = vunpack.c.h.bf16 %v1458
    %v1694 = vunpack.c.l.bf16 %v1459
    %v1695 = vunpack.c.h.bf16 %v1459
    %v1696 = vunpack.c.l.bf16 %v1460
    %v1697 = vunpack.c.h.bf16 %v1460
    %v1698 = vunpack.c.l.bf16 %v1461
    %v1699 = vunpack.c.h.bf16 %v1461
    %v1700 = vunpack.c.l.bf16 %v1462
    %v1701 = vunpack.c.h.bf16 %v1462
    %v1702 = vunpack.c.l.bf16 %v1463
    %v1703 = vunpack.c.h.bf16 %v1463
    %v1704 = vunpack.c.l.bf16 %v1464
    %v1705 = vunpack.c.h.bf16 %v1464
    %v1706 = vunpack.c.l.bf16 %v1465
    %v1707 = vunpack.c.h.bf16 %v1465
    %v1708 = vld [vmem:[#allocation5] sm:$0xff]
    %v1709 = vld [vmem:[#allocation5 + $0x8] sm:$0xff]
    %v1710 = vld [vmem:[#allocation5 + $0x10] sm:$0xff]
    %v1711 = vld [vmem:[#allocation5 + $0x18] sm:$0xff]
    %v1712 = vld [vmem:[#allocation5 + $0x20] sm:$0xff]
    %v1713 = vld [vmem:[#allocation5 + $0x28] sm:$0xff]
    %v1714 = vld [vmem:[#allocation5 + $0x30] sm:$0xff]
    %v1715 = vld [vmem:[#allocation5 + $0x38] sm:$0xff]
    %v1716 = vld [vmem:[#allocation5 + $0x40] sm:$0xff]
    %v1717 = vld [vmem:[#allocation5 + $0x48] sm:$0xff]
    %v1718 = vld [vmem:[#allocation5 + $0x50] sm:$0xff]
    %v1719 = vld [vmem:[#allocation5 + $0x58] sm:$0xff]
    %v1720 = vld [vmem:[#allocation5 + $0x60] sm:$0xff]
    %v1721 = vld [vmem:[#allocation5 + $0x68] sm:$0xff]
    %v1722 = vld [vmem:[#allocation5 + $0x70] sm:$0xff]
    %v1723 = vld [vmem:[#allocation5 + $0x78] sm:$0xff]
    %v1724 = vld [vmem:[#allocation7] sm:$0xff]
    %v1725 = vld [vmem:[#allocation7 + $0x8] sm:$0xff]
    %v1726 = vld [vmem:[#allocation7 + $0x10] sm:$0xff]
    %v1727 = vld [vmem:[#allocation7 + $0x18] sm:$0xff]
    %v1728 = vld [vmem:[#allocation7 + $0x20] sm:$0xff]
    %v1729 = vld [vmem:[#allocation7 + $0x28] sm:$0xff]
    %v1730 = vld [vmem:[#allocation7 + $0x30] sm:$0xff]
    %v1731 = vld [vmem:[#allocation7 + $0x38] sm:$0xff]
    %v1732 = vld [vmem:[#allocation7 + $0x40] sm:$0xff]
    %v1733 = vld [vmem:[#allocation7 + $0x48] sm:$0xff]
    %v1734 = vld [vmem:[#allocation7 + $0x50] sm:$0xff]
    %v1735 = vld [vmem:[#allocation7 + $0x58] sm:$0xff]
    %v1736 = vld [vmem:[#allocation7 + $0x60] sm:$0xff]
    %v1737 = vld [vmem:[#allocation7 + $0x68] sm:$0xff]
    %v1738 = vld [vmem:[#allocation7 + $0x70] sm:$0xff]
    %v1739 = vld [vmem:[#allocation7 + $0x78] sm:$0xff]
    %1740 = vmatpush.msra.mxu0 %v1739
    %1741 = vmatpush.msra.mxu0 %v1738
    %1742 = vmatpush.msra.mxu0 %v1737
    %1743 = vmatpush.msra.mxu0 %v1736
    %1744 = vmatpush.msra.mxu0 %v1735
    %1745 = vmatpush.msra.mxu0 %v1734
    %1746 = vmatpush.msra.mxu0 %v1733
    %1747 = vmatpush.msra.mxu0 %v1732
    %1748 = vmatpush.msra.mxu0 %v1731
    %1749 = vmatpush.msra.mxu0 %v1730
    %1750 = vmatpush.msra.mxu0 %v1729
    %1751 = vmatpush.msra.mxu0 %v1728
    %1752 = vmatpush.msra.mxu0 %v1727
    %1753 = vmatpush.msra.mxu0 %v1726
    %1754 = vmatpush.msra.mxu0 %v1725
    %1755 = vmatpush.msra.mxu0 %v1724
    %1756 = vmatmul.f32.gmra.mxu0 %v1644
    %v1757 = vpop.f32.mrf.mxu0
    %v1758 = vadd.f32 0.0, %v1757
    %1759 = vmatmul.f32.gmra.mxu0 %v1645
    %v1760 = vpop.f32.mrf.mxu0
    %v1761 = vadd.f32 0.0, %v1760
    %1762 = vmatmul.f32.gmra.mxu0 %v1646
    %v1763 = vpop.f32.mrf.mxu0
    %v1764 = vadd.f32 0.0, %v1763
    %1765 = vmatmul.f32.gmra.mxu0 %v1647
    %v1766 = vpop.f32.mrf.mxu0
    %v1767 = vadd.f32 0.0, %v1766
    %1768 = vmatmul.f32.gmra.mxu0 %v1648
    %v1769 = vpop.f32.mrf.mxu0
    %v1770 = vadd.f32 0.0, %v1769
    %1771 = vmatmul.f32.gmra.mxu0 %v1649
    %v1772 = vpop.f32.mrf.mxu0
    %v1773 = vadd.f32 0.0, %v1772
    %1774 = vmatmul.f32.gmra.mxu0 %v1650
    %v1775 = vpop.f32.mrf.mxu0
    %v1776 = vadd.f32 0.0, %v1775
    %1777 = vmatmul.f32.gmra.mxu0 %v1651
    %v1778 = vpop.f32.mrf.mxu0
    %v1779 = vadd.f32 0.0, %v1778
    %1780 = vmatmul.f32.gmra.mxu0 %v1652
    %v1781 = vpop.f32.mrf.mxu0
    %v1782 = vadd.f32 0.0, %v1781
    %1783 = vmatmul.f32.gmra.mxu0 %v1653
    %v1784 = vpop.f32.mrf.mxu0
    %v1785 = vadd.f32 0.0, %v1784
    %1786 = vmatmul.f32.gmra.mxu0 %v1654
    %v1787 = vpop.f32.mrf.mxu0
    %v1788 = vadd.f32 0.0, %v1787
    %1789 = vmatmul.f32.gmra.mxu0 %v1655
    %v1790 = vpop.f32.mrf.mxu0
    %v1791 = vadd.f32 0.0, %v1790
    %1792 = vmatmul.f32.gmra.mxu0 %v1656
    %v1793 = vpop.f32.mrf.mxu0
    %v1794 = vadd.f32 0.0, %v1793
    %1795 = vmatmul.f32.gmra.mxu0 %v1657
    %v1796 = vpop.f32.mrf.mxu0
    %v1797 = vadd.f32 0.0, %v1796
    %1798 = vmatmul.f32.gmra.mxu0 %v1658
    %v1799 = vpop.f32.mrf.mxu0
    %v1800 = vadd.f32 0.0, %v1799
    %1801 = vmatmul.f32.gmra.mxu0 %v1659
    %v1802 = vpop.f32.mrf.mxu0
    %v1803 = vadd.f32 0.0, %v1802
    %1804 = vmatmul.f32.gmra.mxu0 %v1660
    %v1805 = vpop.f32.mrf.mxu0
    %v1806 = vadd.f32 0.0, %v1805
    %1807 = vmatmul.f32.gmra.mxu0 %v1661
    %v1808 = vpop.f32.mrf.mxu0
    %v1809 = vadd.f32 0.0, %v1808
    %1810 = vmatmul.f32.gmra.mxu0 %v1662
    %v1811 = vpop.f32.mrf.mxu0
    %v1812 = vadd.f32 0.0, %v1811
    %1813 = vmatmul.f32.gmra.mxu0 %v1663
    %v1814 = vpop.f32.mrf.mxu0
    %v1815 = vadd.f32 0.0, %v1814
    %1816 = vmatmul.f32.gmra.mxu0 %v1664
    %v1817 = vpop.f32.mrf.mxu0
    %v1818 = vadd.f32 0.0, %v1817
    %1819 = vmatmul.f32.gmra.mxu0 %v1665
    %v1820 = vpop.f32.mrf.mxu0
    %v1821 = vadd.f32 0.0, %v1820
    %1822 = vmatmul.f32.gmra.mxu0 %v1666
    %v1823 = vpop.f32.mrf.mxu0
    %v1824 = vadd.f32 0.0, %v1823
    %1825 = vmatmul.f32.gmra.mxu0 %v1667
    %v1826 = vpop.f32.mrf.mxu0
    %v1827 = vadd.f32 0.0, %v1826
    %1828 = vmatmul.f32.gmra.mxu0 %v1668
    %v1829 = vpop.f32.mrf.mxu0
    %v1830 = vadd.f32 0.0, %v1829
    %1831 = vmatmul.f32.gmra.mxu0 %v1669
    %v1832 = vpop.f32.mrf.mxu0
    %v1833 = vadd.f32 0.0, %v1832
    %1834 = vmatmul.f32.gmra.mxu0 %v1670
    %v1835 = vpop.f32.mrf.mxu0
    %v1836 = vadd.f32 0.0, %v1835
    %1837 = vmatmul.f32.gmra.mxu0 %v1671
    %v1838 = vpop.f32.mrf.mxu0
    %v1839 = vadd.f32 0.0, %v1838
    %1840 = vmatmul.f32.gmra.mxu0 %v1672
    %v1841 = vpop.f32.mrf.mxu0
    %v1842 = vadd.f32 0.0, %v1841
    %1843 = vmatmul.f32.gmra.mxu0 %v1673
    %v1844 = vpop.f32.mrf.mxu0
    %v1845 = vadd.f32 0.0, %v1844
    %1846 = vmatmul.f32.gmra.mxu0 %v1674
    %v1847 = vpop.f32.mrf.mxu0
    %v1848 = vadd.f32 0.0, %v1847
    %1849 = vmatmul.f32.gmra.mxu0 %v1675
    %v1850 = vpop.f32.mrf.mxu0
    %v1851 = vadd.f32 0.0, %v1850
    %1852 = vdwg.mxu0
    %1853 = vmatpush.msra.mxu0 %v1723
    %1854 = vmatpush.msra.mxu0 %v1722
    %1855 = vmatpush.msra.mxu0 %v1721
    %1856 = vmatpush.msra.mxu0 %v1720
    %1857 = vmatpush.msra.mxu0 %v1719
    %1858 = vmatpush.msra.mxu0 %v1718
    %1859 = vmatpush.msra.mxu0 %v1717
    %1860 = vmatpush.msra.mxu0 %v1716
    %1861 = vmatpush.msra.mxu0 %v1715
    %1862 = vmatpush.msra.mxu0 %v1714
    %1863 = vmatpush.msra.mxu0 %v1713
    %1864 = vmatpush.msra.mxu0 %v1712
    %1865 = vmatpush.msra.mxu0 %v1711
    %1866 = vmatpush.msra.mxu0 %v1710
    %1867 = vmatpush.msra.mxu0 %v1709
    %1868 = vmatpush.msra.mxu0 %v1708
    %1869 = vmatmul.f32.gmra.mxu0 %v1676
    %v1870 = vpop.f32.mrf.mxu0
    %v1871 = vadd.f32 %v1758, %v1870
    %1872 = vmatmul.f32.gmra.mxu0 %v1677
    %v1873 = vpop.f32.mrf.mxu0
    %v1874 = vadd.f32 %v1761, %v1873
    %1875 = vmatmul.f32.gmra.mxu0 %v1678
    %v1876 = vpop.f32.mrf.mxu0
    %v1877 = vadd.f32 %v1764, %v1876
    %1878 = vmatmul.f32.gmra.mxu0 %v1679
    %v1879 = vpop.f32.mrf.mxu0
    %v1880 = vadd.f32 %v1767, %v1879
    %1881 = vmatmul.f32.gmra.mxu0 %v1680
    %v1882 = vpop.f32.mrf.mxu0
    %v1883 = vadd.f32 %v1770, %v1882
    %1884 = vmatmul.f32.gmra.mxu0 %v1681
    %v1885 = vpop.f32.mrf.mxu0
    %v1886 = vadd.f32 %v1773, %v1885
    %1887 = vmatmul.f32.gmra.mxu0 %v1682
    %v1888 = vpop.f32.mrf.mxu0
    %v1889 = vadd.f32 %v1776, %v1888
    %1890 = vmatmul.f32.gmra.mxu0 %v1683
    %v1891 = vpop.f32.mrf.mxu0
    %v1892 = vadd.f32 %v1779, %v1891
    %1893 = vmatmul.f32.gmra.mxu0 %v1684
    %v1894 = vpop.f32.mrf.mxu0
    %v1895 = vadd.f32 %v1782, %v1894
    %1896 = vmatmul.f32.gmra.mxu0 %v1685
    %v1897 = vpop.f32.mrf.mxu0
    %v1898 = vadd.f32 %v1785, %v1897
    %1899 = vmatmul.f32.gmra.mxu0 %v1686
    %v1900 = vpop.f32.mrf.mxu0
    %v1901 = vadd.f32 %v1788, %v1900
    %1902 = vmatmul.f32.gmra.mxu0 %v1687
    %v1903 = vpop.f32.mrf.mxu0
    %v1904 = vadd.f32 %v1791, %v1903
    %1905 = vmatmul.f32.gmra.mxu0 %v1688
    %v1906 = vpop.f32.mrf.mxu0
    %v1907 = vadd.f32 %v1794, %v1906
    %1908 = vmatmul.f32.gmra.mxu0 %v1689
    %v1909 = vpop.f32.mrf.mxu0
    %v1910 = vadd.f32 %v1797, %v1909
    %1911 = vmatmul.f32.gmra.mxu0 %v1690
    %v1912 = vpop.f32.mrf.mxu0
    %v1913 = vadd.f32 %v1800, %v1912
    %1914 = vmatmul.f32.gmra.mxu0 %v1691
    %v1915 = vpop.f32.mrf.mxu0
    %v1916 = vadd.f32 %v1803, %v1915
    %1917 = vmatmul.f32.gmra.mxu0 %v1692
    %v1918 = vpop.f32.mrf.mxu0
    %v1919 = vadd.f32 %v1806, %v1918
    %1920 = vmatmul.f32.gmra.mxu0 %v1693
    %v1921 = vpop.f32.mrf.mxu0
    %v1922 = vadd.f32 %v1809, %v1921
    %1923 = vmatmul.f32.gmra.mxu0 %v1694
    %v1924 = vpop.f32.mrf.mxu0
    %v1925 = vadd.f32 %v1812, %v1924
    %1926 = vmatmul.f32.gmra.mxu0 %v1695
    %v1927 = vpop.f32.mrf.mxu0
    %v1928 = vadd.f32 %v1815, %v1927
    %1929 = vmatmul.f32.gmra.mxu0 %v1696
    %v1930 = vpop.f32.mrf.mxu0
    %v1931 = vadd.f32 %v1818, %v1930
    %1932 = vmatmul.f32.gmra.mxu0 %v1697
    %v1933 = vpop.f32.mrf.mxu0
    %v1934 = vadd.f32 %v1821, %v1933
    %1935 = vmatmul.f32.gmra.mxu0 %v1698
    %v1936 = vpop.f32.mrf.mxu0
    %v1937 = vadd.f32 %v1824, %v1936
    %1938 = vmatmul.f32.gmra.mxu0 %v1699
    %v1939 = vpop.f32.mrf.mxu0
    %v1940 = vadd.f32 %v1827, %v1939
    %1941 = vmatmul.f32.gmra.mxu0 %v1700
    %v1942 = vpop.f32.mrf.mxu0
    %v1943 = vadd.f32 %v1830, %v1942
    %1944 = vmatmul.f32.gmra.mxu0 %v1701
    %v1945 = vpop.f32.mrf.mxu0
    %v1946 = vadd.f32 %v1833, %v1945
    %1947 = vmatmul.f32.gmra.mxu0 %v1702
    %v1948 = vpop.f32.mrf.mxu0
    %v1949 = vadd.f32 %v1836, %v1948
    %1950 = vmatmul.f32.gmra.mxu0 %v1703
    %v1951 = vpop.f32.mrf.mxu0
    %v1952 = vadd.f32 %v1839, %v1951
    %1953 = vmatmul.f32.gmra.mxu0 %v1704
    %v1954 = vpop.f32.mrf.mxu0
    %v1955 = vadd.f32 %v1842, %v1954
    %1956 = vmatmul.f32.gmra.mxu0 %v1705
    %v1957 = vpop.f32.mrf.mxu0
    %v1958 = vadd.f32 %v1845, %v1957
    %1959 = vmatmul.f32.gmra.mxu0 %v1706
    %v1960 = vpop.f32.mrf.mxu0
    %v1961 = vadd.f32 %v1848, %v1960
    %1962 = vmatmul.f32.gmra.mxu0 %v1707
    %v1963 = vpop.f32.mrf.mxu0
    %v1964 = vadd.f32 %v1851, %v1963
    %1965 = vdwg.mxu0
    %v1966 = vld [vmem:[%s9] sm:$0x1]
    %v1968 = vperm.slane %v1966, 0
    %v1970 = vadd.f32 %v1871, %v1968
    %v1971 = vadd.f32 %v1874, %v1968
    %v1972 = vadd.f32 %v1877, %v1968
    %v1973 = vadd.f32 %v1880, %v1968
    %v1974 = vadd.f32 %v1883, %v1968
    %v1975 = vadd.f32 %v1886, %v1968
    %v1976 = vadd.f32 %v1889, %v1968
    %v1977 = vadd.f32 %v1892, %v1968
    %v1978 = vadd.f32 %v1895, %v1968
    %v1979 = vadd.f32 %v1898, %v1968
    %v1980 = vadd.f32 %v1901, %v1968
    %v1981 = vadd.f32 %v1904, %v1968
    %v1982 = vadd.f32 %v1907, %v1968
    %v1983 = vadd.f32 %v1910, %v1968
    %v1984 = vadd.f32 %v1913, %v1968
    %v1985 = vadd.f32 %v1916, %v1968
    %v1986 = vadd.f32 %v1919, %v1968
    %v1987 = vadd.f32 %v1922, %v1968
    %v1988 = vadd.f32 %v1925, %v1968
    %v1989 = vadd.f32 %v1928, %v1968
    %v1990 = vadd.f32 %v1931, %v1968
    %v1991 = vadd.f32 %v1934, %v1968
    %v1992 = vadd.f32 %v1937, %v1968
    %v1993 = vadd.f32 %v1940, %v1968
    %v1994 = vadd.f32 %v1943, %v1968
    %v1995 = vadd.f32 %v1946, %v1968
    %v1996 = vadd.f32 %v1949, %v1968
    %v1997 = vadd.f32 %v1952, %v1968
    %v1998 = vadd.f32 %v1955, %v1968
    %v1999 = vadd.f32 %v1958, %v1968
    %v2000 = vadd.f32 %v1961, %v1968
    %v2001 = vadd.f32 %v1964, %v1968
    %v2002 = vld [vmem:[#allocation8] sm:$0xff]
    %v2003 = vld [vmem:[#allocation8 + $0x8] sm:$0xff]
    %v2004 = vld [vmem:[#allocation8 + $0x10] sm:$0xff]
    %v2005 = vld [vmem:[#allocation8 + $0x18] sm:$0xff]
    %v2006 = vld [vmem:[#allocation8 + $0x20] sm:$0xff]
    %v2007 = vld [vmem:[#allocation8 + $0x28] sm:$0xff]
    %v2008 = vld [vmem:[#allocation8 + $0x30] sm:$0xff]
    %v2009 = vld [vmem:[#allocation8 + $0x38] sm:$0xff]
    %v2010 = vld [vmem:[#allocation8 + $0x40] sm:$0xff]
    %v2011 = vld [vmem:[#allocation8 + $0x48] sm:$0xff]
    %v2012 = vld [vmem:[#allocation8 + $0x50] sm:$0xff]
    %v2013 = vld [vmem:[#allocation8 + $0x58] sm:$0xff]
    %v2014 = vld [vmem:[#allocation8 + $0x60] sm:$0xff]
    %v2015 = vld [vmem:[#allocation8 + $0x68] sm:$0xff]
    %v2016 = vld [vmem:[#allocation8 + $0x70] sm:$0xff]
    %v2017 = vld [vmem:[#allocation8 + $0x78] sm:$0xff]
    %v2018 = vld [vmem:[%s11] sm:$0x1]
    %v2020 = vperm.slane %v2018, 0
    %2022 = vmatpush.msra.mxu0 %v2017
    %2023 = vmatpush.msra.mxu0 %v2016
    %2024 = vmatpush.msra.mxu0 %v2015
    %2025 = vmatpush.msra.mxu0 %v2014
    %2026 = vmatpush.msra.mxu0 %v2013
    %2027 = vmatpush.msra.mxu0 %v2012
    %2028 = vmatpush.msra.mxu0 %v2011
    %2029 = vmatpush.msra.mxu0 %v2010
    %2030 = vmatpush.msra.mxu0 %v2009
    %2031 = vmatpush.msra.mxu0 %v2008
    %2032 = vmatpush.msra.mxu0 %v2007
    %2033 = vmatpush.msra.mxu0 %v2006
    %2034 = vmatpush.msra.mxu0 %v2005
    %2035 = vmatpush.msra.mxu0 %v2004
    %2036 = vmatpush.msra.mxu0 %v2003
    %2037 = vmatpush.msra.mxu0 %v2002
    %2038 = vmatmul.f32.gmra.mxu0 %v1970
    %v2039 = vpop.f32.mrf.mxu0
    %v2040 = vadd.f32 %v2020, %v2039
    %2041 = vmatmul.f32.gmra.mxu0 %v1971
    %v2042 = vpop.f32.mrf.mxu0
    %v2043 = vadd.f32 %v2020, %v2042
    %2044 = vmatmul.f32.gmra.mxu0 %v1972
    %v2045 = vpop.f32.mrf.mxu0
    %v2046 = vadd.f32 %v2020, %v2045
    %2047 = vmatmul.f32.gmra.mxu0 %v1973
    %v2048 = vpop.f32.mrf.mxu0
    %v2049 = vadd.f32 %v2020, %v2048
    %2050 = vmatmul.f32.gmra.mxu0 %v1974
    %v2051 = vpop.f32.mrf.mxu0
    %v2052 = vadd.f32 %v2020, %v2051
    %2053 = vmatmul.f32.gmra.mxu0 %v1975
    %v2054 = vpop.f32.mrf.mxu0
    %v2055 = vadd.f32 %v2020, %v2054
    %2056 = vmatmul.f32.gmra.mxu0 %v1976
    %v2057 = vpop.f32.mrf.mxu0
    %v2058 = vadd.f32 %v2020, %v2057
    %2059 = vmatmul.f32.gmra.mxu0 %v1977
    %v2060 = vpop.f32.mrf.mxu0
    %v2061 = vadd.f32 %v2020, %v2060
    %2062 = vmatmul.f32.gmra.mxu0 %v1978
    %v2063 = vpop.f32.mrf.mxu0
    %v2064 = vadd.f32 %v2020, %v2063
    %2065 = vmatmul.f32.gmra.mxu0 %v1979
    %v2066 = vpop.f32.mrf.mxu0
    %v2067 = vadd.f32 %v2020, %v2066
    %2068 = vmatmul.f32.gmra.mxu0 %v1980
    %v2069 = vpop.f32.mrf.mxu0
    %v2070 = vadd.f32 %v2020, %v2069
    %2071 = vmatmul.f32.gmra.mxu0 %v1981
    %v2072 = vpop.f32.mrf.mxu0
    %v2073 = vadd.f32 %v2020, %v2072
    %2074 = vmatmul.f32.gmra.mxu0 %v1982
    %v2075 = vpop.f32.mrf.mxu0
    %v2076 = vadd.f32 %v2020, %v2075
    %2077 = vmatmul.f32.gmra.mxu0 %v1983
    %v2078 = vpop.f32.mrf.mxu0
    %v2079 = vadd.f32 %v2020, %v2078
    %2080 = vmatmul.f32.gmra.mxu0 %v1984
    %v2081 = vpop.f32.mrf.mxu0
    %v2082 = vadd.f32 %v2020, %v2081
    %2083 = vmatmul.f32.gmra.mxu0 %v1985
    %v2084 = vpop.f32.mrf.mxu0
    %v2085 = vadd.f32 %v2020, %v2084
    %2086 = vmatmul.f32.gmra.mxu0 %v1986
    %v2087 = vpop.f32.mrf.mxu0
    %v2088 = vadd.f32 %v2020, %v2087
    %2089 = vmatmul.f32.gmra.mxu0 %v1987
    %v2090 = vpop.f32.mrf.mxu0
    %v2091 = vadd.f32 %v2020, %v2090
    %2092 = vmatmul.f32.gmra.mxu0 %v1988
    %v2093 = vpop.f32.mrf.mxu0
    %v2094 = vadd.f32 %v2020, %v2093
    %2095 = vmatmul.f32.gmra.mxu0 %v1989
    %v2096 = vpop.f32.mrf.mxu0
    %v2097 = vadd.f32 %v2020, %v2096
    %2098 = vmatmul.f32.gmra.mxu0 %v1990
    %v2099 = vpop.f32.mrf.mxu0
    %v2100 = vadd.f32 %v2020, %v2099
    %2101 = vmatmul.f32.gmra.mxu0 %v1991
    %v2102 = vpop.f32.mrf.mxu0
    %v2103 = vadd.f32 %v2020, %v2102
    %2104 = vmatmul.f32.gmra.mxu0 %v1992
    %v2105 = vpop.f32.mrf.mxu0
    %v2106 = vadd.f32 %v2020, %v2105
    %2107 = vmatmul.f32.gmra.mxu0 %v1993
    %v2108 = vpop.f32.mrf.mxu0
    %v2109 = vadd.f32 %v2020, %v2108
    %2110 = vmatmul.f32.gmra.mxu0 %v1994
    %v2111 = vpop.f32.mrf.mxu0
    %v2112 = vadd.f32 %v2020, %v2111
    %2113 = vmatmul.f32.gmra.mxu0 %v1995
    %v2114 = vpop.f32.mrf.mxu0
    %v2115 = vadd.f32 %v2020, %v2114
    %2116 = vmatmul.f32.gmra.mxu0 %v1996
    %v2117 = vpop.f32.mrf.mxu0
    %v2118 = vadd.f32 %v2020, %v2117
    %2119 = vmatmul.f32.gmra.mxu0 %v1997
    %v2120 = vpop.f32.mrf.mxu0
    %v2121 = vadd.f32 %v2020, %v2120
    %2122 = vmatmul.f32.gmra.mxu0 %v1998
    %v2123 = vpop.f32.mrf.mxu0
    %v2124 = vadd.f32 %v2020, %v2123
    %2125 = vmatmul.f32.gmra.mxu0 %v1999
    %v2126 = vpop.f32.mrf.mxu0
    %v2127 = vadd.f32 %v2020, %v2126
    %2128 = vmatmul.f32.gmra.mxu0 %v2000
    %v2129 = vpop.f32.mrf.mxu0
    %v2130 = vadd.f32 %v2020, %v2129
    %2131 = vmatmul.f32.gmra.mxu0 %v2001
    %v2132 = vpop.f32.mrf.mxu0
    %v2133 = vadd.f32 %v2020, %v2132
    %2134 = vdwg.mxu0
    %v2135 = vlaneseq
    %v2136 = vand.u32 %v2135, 127
    %vm2137 = vcmp.lt.s32.totalorder %v2136, 8
    %v2138 = vsel %vm2137, %v2040, -1e+30
    %v2139 = vsel %vm2137, %v2043, -1e+30
    %v2140 = vsel %vm2137, %v2046, -1e+30
    %v2141 = vsel %vm2137, %v2049, -1e+30
    %v2142 = vsel %vm2137, %v2052, -1e+30
    %v2143 = vsel %vm2137, %v2055, -1e+30
    %v2144 = vsel %vm2137, %v2058, -1e+30
    %v2145 = vsel %vm2137, %v2061, -1e+30
    %v2146 = vsel %vm2137, %v2064, -1e+30
    %v2147 = vsel %vm2137, %v2067, -1e+30
    %v2148 = vsel %vm2137, %v2070, -1e+30
    %v2149 = vsel %vm2137, %v2073, -1e+30
    %v2150 = vsel %vm2137, %v2076, -1e+30
    %v2151 = vsel %vm2137, %v2079, -1e+30
    %v2152 = vsel %vm2137, %v2082, -1e+30
    %v2153 = vsel %vm2137, %v2085, -1e+30
    %v2154 = vsel %vm2137, %v2088, -1e+30
    %v2155 = vsel %vm2137, %v2091, -1e+30
    %v2156 = vsel %vm2137, %v2094, -1e+30
    %v2157 = vsel %vm2137, %v2097, -1e+30
    %v2158 = vsel %vm2137, %v2100, -1e+30
    %v2159 = vsel %vm2137, %v2103, -1e+30
    %v2160 = vsel %vm2137, %v2106, -1e+30
    %v2161 = vsel %vm2137, %v2109, -1e+30
    %v2162 = vsel %vm2137, %v2112, -1e+30
    %v2163 = vsel %vm2137, %v2115, -1e+30
    %v2164 = vsel %vm2137, %v2118, -1e+30
    %v2165 = vsel %vm2137, %v2121, -1e+30
    %v2166 = vsel %vm2137, %v2124, -1e+30
    %v2167 = vsel %vm2137, %v2127, -1e+30
    %v2168 = vsel %vm2137, %v2130, -1e+30
    %v2169 = vsel %vm2137, %v2133, -1e+30
    %2170 = vmax.xlane.f32.xlu0 %v2138
    %v2171 = vpop.xlane.xlu0 %2170
    %2172 = vmax.xlane.f32.xlu0 %v2139
    %v2173 = vpop.xlane.xlu0 %2172
    %2174 = vmax.xlane.f32.xlu0 %v2140
    %v2175 = vpop.xlane.xlu0 %2174
    %2176 = vmax.xlane.f32.xlu0 %v2141
    %v2177 = vpop.xlane.xlu0 %2176
    %2178 = vmax.xlane.f32.xlu0 %v2142
    %v2179 = vpop.xlane.xlu0 %2178
    %2180 = vmax.xlane.f32.xlu0 %v2143
    %v2181 = vpop.xlane.xlu0 %2180
    %2182 = vmax.xlane.f32.xlu0 %v2144
    %v2183 = vpop.xlane.xlu0 %2182
    %2184 = vmax.xlane.f32.xlu0 %v2145
    %v2185 = vpop.xlane.xlu0 %2184
    %2186 = vmax.xlane.f32.xlu0 %v2146
    %v2187 = vpop.xlane.xlu0 %2186
    %2188 = vmax.xlane.f32.xlu0 %v2147
    %v2189 = vpop.xlane.xlu0 %2188
    %2190 = vmax.xlane.f32.xlu0 %v2148
    %v2191 = vpop.xlane.xlu0 %2190
    %2192 = vmax.xlane.f32.xlu0 %v2149
    %v2193 = vpop.xlane.xlu0 %2192
    %2194 = vmax.xlane.f32.xlu0 %v2150
    %v2195 = vpop.xlane.xlu0 %2194
    %2196 = vmax.xlane.f32.xlu0 %v2151
    %v2197 = vpop.xlane.xlu0 %2196
    %2198 = vmax.xlane.f32.xlu0 %v2152
    %v2199 = vpop.xlane.xlu0 %2198
    %2200 = vmax.xlane.f32.xlu0 %v2153
    %v2201 = vpop.xlane.xlu0 %2200
    %2202 = vmax.xlane.f32.xlu0 %v2154
    %v2203 = vpop.xlane.xlu0 %2202
    %2204 = vmax.xlane.f32.xlu0 %v2155
    %v2205 = vpop.xlane.xlu0 %2204
    %2206 = vmax.xlane.f32.xlu0 %v2156
    %v2207 = vpop.xlane.xlu0 %2206
    %2208 = vmax.xlane.f32.xlu0 %v2157
    %v2209 = vpop.xlane.xlu0 %2208
    %2210 = vmax.xlane.f32.xlu0 %v2158
    %v2211 = vpop.xlane.xlu0 %2210
    %2212 = vmax.xlane.f32.xlu0 %v2159
    %v2213 = vpop.xlane.xlu0 %2212
    %2214 = vmax.xlane.f32.xlu0 %v2160
    %v2215 = vpop.xlane.xlu0 %2214
    %2216 = vmax.xlane.f32.xlu0 %v2161
    %v2217 = vpop.xlane.xlu0 %2216
    %2218 = vmax.xlane.f32.xlu0 %v2162
    %v2219 = vpop.xlane.xlu0 %2218
    %2220 = vmax.xlane.f32.xlu0 %v2163
    %v2221 = vpop.xlane.xlu0 %2220
    %2222 = vmax.xlane.f32.xlu0 %v2164
    %v2223 = vpop.xlane.xlu0 %2222
    %2224 = vmax.xlane.f32.xlu0 %v2165
    %v2225 = vpop.xlane.xlu0 %2224
    %2226 = vmax.xlane.f32.xlu0 %v2166
    %v2227 = vpop.xlane.xlu0 %2226
    %2228 = vmax.xlane.f32.xlu0 %v2167
    %v2229 = vpop.xlane.xlu0 %2228
    %2230 = vmax.xlane.f32.xlu0 %v2168
    %v2231 = vpop.xlane.xlu0 %2230
    %2232 = vmax.xlane.f32.xlu0 %v2169
    %v2233 = vpop.xlane.xlu0 %2232
    %v2234 = vsub.f32 %v2138, %v2171
    %v2235 = vsub.f32 %v2139, %v2173
    %v2236 = vsub.f32 %v2140, %v2175
    %v2237 = vsub.f32 %v2141, %v2177
    %v2238 = vsub.f32 %v2142, %v2179
    %v2239 = vsub.f32 %v2143, %v2181
    %v2240 = vsub.f32 %v2144, %v2183
    %v2241 = vsub.f32 %v2145, %v2185
    %v2242 = vsub.f32 %v2146, %v2187
    %v2243 = vsub.f32 %v2147, %v2189
    %v2244 = vsub.f32 %v2148, %v2191
    %v2245 = vsub.f32 %v2149, %v2193
    %v2246 = vsub.f32 %v2150, %v2195
    %v2247 = vsub.f32 %v2151, %v2197
    %v2248 = vsub.f32 %v2152, %v2199
    %v2249 = vsub.f32 %v2153, %v2201
    %v2250 = vsub.f32 %v2154, %v2203
    %v2251 = vsub.f32 %v2155, %v2205
    %v2252 = vsub.f32 %v2156, %v2207
    %v2253 = vsub.f32 %v2157, %v2209
    %v2254 = vsub.f32 %v2158, %v2211
    %v2255 = vsub.f32 %v2159, %v2213
    %v2256 = vsub.f32 %v2160, %v2215
    %v2257 = vsub.f32 %v2161, %v2217
    %v2258 = vsub.f32 %v2162, %v2219
    %v2259 = vsub.f32 %v2163, %v2221
    %v2260 = vsub.f32 %v2164, %v2223
    %v2261 = vsub.f32 %v2165, %v2225
    %v2262 = vsub.f32 %v2166, %v2227
    %v2263 = vsub.f32 %v2167, %v2229
    %v2264 = vsub.f32 %v2168, %v2231
    %v2265 = vsub.f32 %v2169, %v2233
    %v2266 = vmul.f32 %v2234, 1.442695
    %v2267 = vpow.pop %v2266
    %v2268 = vmul.f32 %v2235, 1.442695
    %v2269 = vpow.pop %v2268
    %v2270 = vmul.f32 %v2236, 1.442695
    %v2271 = vpow.pop %v2270
    %v2272 = vmul.f32 %v2237, 1.442695
    %v2273 = vpow.pop %v2272
    %v2274 = vmul.f32 %v2238, 1.442695
    %v2275 = vpow.pop %v2274
    %v2276 = vmul.f32 %v2239, 1.442695
    %v2277 = vpow.pop %v2276
    %v2278 = vmul.f32 %v2240, 1.442695
    %v2279 = vpow.pop %v2278
    %v2280 = vmul.f32 %v2241, 1.442695
    %v2281 = vpow.pop %v2280
    %v2282 = vmul.f32 %v2242, 1.442695
    %v2283 = vpow.pop %v2282
    %v2284 = vmul.f32 %v2243, 1.442695
    %v2285 = vpow.pop %v2284
    %v2286 = vmul.f32 %v2244, 1.442695
    %v2287 = vpow.pop %v2286
    %v2288 = vmul.f32 %v2245, 1.442695
    %v2289 = vpow.pop %v2288
    %v2290 = vmul.f32 %v2246, 1.442695
    %v2291 = vpow.pop %v2290
    %v2292 = vmul.f32 %v2247, 1.442695
    %v2293 = vpow.pop %v2292
    %v2294 = vmul.f32 %v2248, 1.442695
    %v2295 = vpow.pop %v2294
    %v2296 = vmul.f32 %v2249, 1.442695
    %v2297 = vpow.pop %v2296
    %v2298 = vmul.f32 %v2250, 1.442695
    %v2299 = vpow.pop %v2298
    %v2300 = vmul.f32 %v2251, 1.442695
    %v2301 = vpow.pop %v2300
    %v2302 = vmul.f32 %v2252, 1.442695
    %v2303 = vpow.pop %v2302
    %v2304 = vmul.f32 %v2253, 1.442695
    %v2305 = vpow.pop %v2304
    %v2306 = vmul.f32 %v2254, 1.442695
    %v2307 = vpow.pop %v2306
    %v2308 = vmul.f32 %v2255, 1.442695
    %v2309 = vpow.pop %v2308
    %v2310 = vmul.f32 %v2256, 1.442695
    %v2311 = vpow.pop %v2310
    %v2312 = vmul.f32 %v2257, 1.442695
    %v2313 = vpow.pop %v2312
    %v2314 = vmul.f32 %v2258, 1.442695
    %v2315 = vpow.pop %v2314
    %v2316 = vmul.f32 %v2259, 1.442695
    %v2317 = vpow.pop %v2316
    %v2318 = vmul.f32 %v2260, 1.442695
    %v2319 = vpow.pop %v2318
    %v2320 = vmul.f32 %v2261, 1.442695
    %v2321 = vpow.pop %v2320
    %v2322 = vmul.f32 %v2262, 1.442695
    %v2323 = vpow.pop %v2322
    %v2324 = vmul.f32 %v2263, 1.442695
    %v2325 = vpow.pop %v2324
    %v2326 = vmul.f32 %v2264, 1.442695
    %v2327 = vpow.pop %v2326
    %v2328 = vmul.f32 %v2265, 1.442695
    %v2329 = vpow.pop %v2328
    %2330 = vadd.xlane.f32.xlu0 %v2267
    %v2331 = vpop.xlane.xlu0 %2330
    %2332 = vadd.xlane.f32.xlu0 %v2269
    %v2333 = vpop.xlane.xlu0 %2332
    %2334 = vadd.xlane.f32.xlu0 %v2271
    %v2335 = vpop.xlane.xlu0 %2334
    %2336 = vadd.xlane.f32.xlu0 %v2273
    %v2337 = vpop.xlane.xlu0 %2336
    %2338 = vadd.xlane.f32.xlu0 %v2275
    %v2339 = vpop.xlane.xlu0 %2338
    %2340 = vadd.xlane.f32.xlu0 %v2277
    %v2341 = vpop.xlane.xlu0 %2340
    %2342 = vadd.xlane.f32.xlu0 %v2279
    %v2343 = vpop.xlane.xlu0 %2342
    %2344 = vadd.xlane.f32.xlu0 %v2281
    %v2345 = vpop.xlane.xlu0 %2344
    %2346 = vadd.xlane.f32.xlu0 %v2283
    %v2347 = vpop.xlane.xlu0 %2346
    %2348 = vadd.xlane.f32.xlu0 %v2285
    %v2349 = vpop.xlane.xlu0 %2348
    %2350 = vadd.xlane.f32.xlu0 %v2287
    %v2351 = vpop.xlane.xlu0 %2350
    %2352 = vadd.xlane.f32.xlu0 %v2289
    %v2353 = vpop.xlane.xlu0 %2352
    %2354 = vadd.xlane.f32.xlu0 %v2291
    %v2355 = vpop.xlane.xlu0 %2354
    %2356 = vadd.xlane.f32.xlu0 %v2293
    %v2357 = vpop.xlane.xlu0 %2356
    %2358 = vadd.xlane.f32.xlu0 %v2295
    %v2359 = vpop.xlane.xlu0 %2358
    %2360 = vadd.xlane.f32.xlu0 %v2297
    %v2361 = vpop.xlane.xlu0 %2360
    %2362 = vadd.xlane.f32.xlu0 %v2299
    %v2363 = vpop.xlane.xlu0 %2362
    %2364 = vadd.xlane.f32.xlu0 %v2301
    %v2365 = vpop.xlane.xlu0 %2364
    %2366 = vadd.xlane.f32.xlu0 %v2303
    %v2367 = vpop.xlane.xlu0 %2366
    %2368 = vadd.xlane.f32.xlu0 %v2305
    %v2369 = vpop.xlane.xlu0 %2368
    %2370 = vadd.xlane.f32.xlu0 %v2307
    %v2371 = vpop.xlane.xlu0 %2370
    %2372 = vadd.xlane.f32.xlu0 %v2309
    %v2373 = vpop.xlane.xlu0 %2372
    %2374 = vadd.xlane.f32.xlu0 %v2311
    %v2375 = vpop.xlane.xlu0 %2374
    %2376 = vadd.xlane.f32.xlu0 %v2313
    %v2377 = vpop.xlane.xlu0 %2376
    %2378 = vadd.xlane.f32.xlu0 %v2315
    %v2379 = vpop.xlane.xlu0 %2378
    %2380 = vadd.xlane.f32.xlu0 %v2317
    %v2381 = vpop.xlane.xlu0 %2380
    %2382 = vadd.xlane.f32.xlu0 %v2319
    %v2383 = vpop.xlane.xlu0 %2382
    %2384 = vadd.xlane.f32.xlu0 %v2321
    %v2385 = vpop.xlane.xlu0 %2384
    %2386 = vadd.xlane.f32.xlu0 %v2323
    %v2387 = vpop.xlane.xlu0 %2386
    %2388 = vadd.xlane.f32.xlu0 %v2325
    %v2389 = vpop.xlane.xlu0 %2388
    %2390 = vadd.xlane.f32.xlu0 %v2327
    %v2391 = vpop.xlane.xlu0 %2390
    %2392 = vadd.xlane.f32.xlu0 %v2329
    %v2393 = vpop.xlane.xlu0 %2392
    %v2394 = vlog2.pop %v2331
    %v2395 = vmul.f32 %v2394, 0.6931472
    %v2396 = vlog2.pop %v2333
    %v2397 = vmul.f32 %v2396, 0.6931472
    %v2398 = vlog2.pop %v2335
    %v2399 = vmul.f32 %v2398, 0.6931472
    %v2400 = vlog2.pop %v2337
    %v2401 = vmul.f32 %v2400, 0.6931472
    %v2402 = vlog2.pop %v2339
    %v2403 = vmul.f32 %v2402, 0.6931472
    %v2404 = vlog2.pop %v2341
    %v2405 = vmul.f32 %v2404, 0.6931472
    %v2406 = vlog2.pop %v2343
    %v2407 = vmul.f32 %v2406, 0.6931472
    %v2408 = vlog2.pop %v2345
    %v2409 = vmul.f32 %v2408, 0.6931472
    %v2410 = vlog2.pop %v2347
    %v2411 = vmul.f32 %v2410, 0.6931472
    %v2412 = vlog2.pop %v2349
    %v2413 = vmul.f32 %v2412, 0.6931472
    %v2414 = vlog2.pop %v2351
    %v2415 = vmul.f32 %v2414, 0.6931472
    %v2416 = vlog2.pop %v2353
    %v2417 = vmul.f32 %v2416, 0.6931472
    %v2418 = vlog2.pop %v2355
    %v2419 = vmul.f32 %v2418, 0.6931472
    %v2420 = vlog2.pop %v2357
    %v2421 = vmul.f32 %v2420, 0.6931472
    %v2422 = vlog2.pop %v2359
    %v2423 = vmul.f32 %v2422, 0.6931472
    %v2424 = vlog2.pop %v2361
    %v2425 = vmul.f32 %v2424, 0.6931472
    %v2426 = vlog2.pop %v2363
    %v2427 = vmul.f32 %v2426, 0.6931472
    %v2428 = vlog2.pop %v2365
    %v2429 = vmul.f32 %v2428, 0.6931472
    %v2430 = vlog2.pop %v2367
    %v2431 = vmul.f32 %v2430, 0.6931472
    %v2432 = vlog2.pop %v2369
    %v2433 = vmul.f32 %v2432, 0.6931472
    %v2434 = vlog2.pop %v2371
    %v2435 = vmul.f32 %v2434, 0.6931472
    %v2436 = vlog2.pop %v2373
    %v2437 = vmul.f32 %v2436, 0.6931472
    %v2438 = vlog2.pop %v2375
    %v2439 = vmul.f32 %v2438, 0.6931472
    %v2440 = vlog2.pop %v2377
    %v2441 = vmul.f32 %v2440, 0.6931472
    %v2442 = vlog2.pop %v2379
    %v2443 = vmul.f32 %v2442, 0.6931472
    %v2444 = vlog2.pop %v2381
    %v2445 = vmul.f32 %v2444, 0.6931472
    %v2446 = vlog2.pop %v2383
    %v2447 = vmul.f32 %v2446, 0.6931472
    %v2448 = vlog2.pop %v2385
    %v2449 = vmul.f32 %v2448, 0.6931472
    %v2450 = vlog2.pop %v2387
    %v2451 = vmul.f32 %v2450, 0.6931472
    %v2452 = vlog2.pop %v2389
    %v2453 = vmul.f32 %v2452, 0.6931472
    %v2454 = vlog2.pop %v2391
    %v2455 = vmul.f32 %v2454, 0.6931472
    %v2456 = vlog2.pop %v2393
    %v2457 = vmul.f32 %v2456, 0.6931472
    %v2458 = vsub.f32 %v2234, %v2395
    %v2459 = vsub.f32 %v2235, %v2397
    %v2460 = vsub.f32 %v2236, %v2399
    %v2461 = vsub.f32 %v2237, %v2401
    %v2462 = vsub.f32 %v2238, %v2403
    %v2463 = vsub.f32 %v2239, %v2405
    %v2464 = vsub.f32 %v2240, %v2407
    %v2465 = vsub.f32 %v2241, %v2409
    %v2466 = vsub.f32 %v2242, %v2411
    %v2467 = vsub.f32 %v2243, %v2413
    %v2468 = vsub.f32 %v2244, %v2415
    %v2469 = vsub.f32 %v2245, %v2417
    %v2470 = vsub.f32 %v2246, %v2419
    %v2471 = vsub.f32 %v2247, %v2421
    %v2472 = vsub.f32 %v2248, %v2423
    %v2473 = vsub.f32 %v2249, %v2425
    %v2474 = vsub.f32 %v2250, %v2427
    %v2475 = vsub.f32 %v2251, %v2429
    %v2476 = vsub.f32 %v2252, %v2431
    %v2477 = vsub.f32 %v2253, %v2433
    %v2478 = vsub.f32 %v2254, %v2435
    %v2479 = vsub.f32 %v2255, %v2437
    %v2480 = vsub.f32 %v2256, %v2439
    %v2481 = vsub.f32 %v2257, %v2441
    %v2482 = vsub.f32 %v2258, %v2443
    %v2483 = vsub.f32 %v2259, %v2445
    %v2484 = vsub.f32 %v2260, %v2447
    %v2485 = vsub.f32 %v2261, %v2449
    %v2486 = vsub.f32 %v2262, %v2451
    %v2487 = vsub.f32 %v2263, %v2453
    %v2488 = vsub.f32 %v2264, %v2455
    %v2489 = vsub.f32 %v2265, %v2457
    %2490 = vst [vmem:[#allocation10] sm:$0xff] %v2458
    %2491 = vst [vmem:[#allocation10 + $0x8] sm:$0xff] %v2459
    %2492 = vst [vmem:[#allocation10 + $0x10] sm:$0xff] %v2460
    %2493 = vst [vmem:[#allocation10 + $0x18] sm:$0xff] %v2461
    %2494 = vst [vmem:[#allocation10 + $0x20] sm:$0xff] %v2462
    %2495 = vst [vmem:[#allocation10 + $0x28] sm:$0xff] %v2463
    %2496 = vst [vmem:[#allocation10 + $0x30] sm:$0xff] %v2464
    %2497 = vst [vmem:[#allocation10 + $0x38] sm:$0xff] %v2465
    %2498 = vst [vmem:[#allocation10 + $0x40] sm:$0xff] %v2466
    %2499 = vst [vmem:[#allocation10 + $0x48] sm:$0xff] %v2467
    %2500 = vst [vmem:[#allocation10 + $0x50] sm:$0xff] %v2468
    %2501 = vst [vmem:[#allocation10 + $0x58] sm:$0xff] %v2469
    %2502 = vst [vmem:[#allocation10 + $0x60] sm:$0xff] %v2470
    %2503 = vst [vmem:[#allocation10 + $0x68] sm:$0xff] %v2471
    %2504 = vst [vmem:[#allocation10 + $0x70] sm:$0xff] %v2472
    %2505 = vst [vmem:[#allocation10 + $0x78] sm:$0xff] %v2473
    %2506 = vst [vmem:[#allocation10 + $0x80] sm:$0xff] %v2474
    %2507 = vst [vmem:[#allocation10 + $0x88] sm:$0xff] %v2475
    %2508 = vst [vmem:[#allocation10 + $0x90] sm:$0xff] %v2476
    %2509 = vst [vmem:[#allocation10 + $0x98] sm:$0xff] %v2477
    %2510 = vst [vmem:[#allocation10 + $0xa0] sm:$0xff] %v2478
    %2511 = vst [vmem:[#allocation10 + $0xa8] sm:$0xff] %v2479
    %2512 = vst [vmem:[#allocation10 + $0xb0] sm:$0xff] %v2480
    %2513 = vst [vmem:[#allocation10 + $0xb8] sm:$0xff] %v2481
    %2514 = vst [vmem:[#allocation10 + $0xc0] sm:$0xff] %v2482
    %2515 = vst [vmem:[#allocation10 + $0xc8] sm:$0xff] %v2483
    %2516 = vst [vmem:[#allocation10 + $0xd0] sm:$0xff] %v2484
    %2517 = vst [vmem:[#allocation10 + $0xd8] sm:$0xff] %v2485
    %2518 = vst [vmem:[#allocation10 + $0xe0] sm:$0xff] %v2486
    %2519 = vst [vmem:[#allocation10 + $0xe8] sm:$0xff] %v2487
    %2520 = vst [vmem:[#allocation10 + $0xf0] sm:$0xff] %v2488
    %2521 = vst [vmem:[#allocation10 + $0xf8] sm:$0xff] %v2489
    // Predicated region
    $region66: #{tpu_custom_call.1} parent=1 // pred_check
      _
    $region67: #{tpu_custom_call.1} parent=1 // pred_check_branch
      %2523 = sbr.rel (0) target = $region69
    $region68: #{tpu_custom_call.1} parent=1 // pred_region
      %2525 = vsyncadd [#allocation4], 0
      %s2526 = sshll.u32 [#allocation10], 4
      %s2527 = int_to_ptr.vmem [resolvable:$true] %s2526
      %s2528 = sshll.u32 %s12, 4
      %s2529 = int_to_ptr.hbm [resolvable:$true] %s2528
      %2534 = dma.vmem_to_hbm [thread:$0]  %s2527, 4096, %s2529, [#allocation4], 128, 128, 8
    $region69: #{tpu_custom_call.1} parent=1 // pred_fallthru
      _
    // Predicated region
    $region70: #{tpu_custom_call.1} parent=1 // pred_check
      _
    $region71: #{tpu_custom_call.1} parent=1 // pred_check_branch
      %2536 = sbr.rel (0) target = $region73
    $region72: #{tpu_custom_call.1} parent=1 // pred_region
      %2538 = dma.done [#allocation4], 4096
    $region73: #{tpu_custom_call.1} parent=1 // pred_fallthru
      _
    %2539 = vsyncpa [#allocation3], 1
    %2540 = vsyncpa [#allocation6], 1
    %2541 = vsyncpa [#allocation9], 1
    %2542 = vsyncpa [#allocation4], 1

</llo_original>
